<compile_context>
chip_gen: v7x
topology: tpu7x:2x2x1
jax: 0.10.0
libtpu: 0.0.40
codegen_flags: <defaults>
</compile_context>

<pallas_src>
import jax
import jax.numpy as jnp
from jax import lax
from jax.experimental import pallas as pl
from jax.experimental.pallas import tpu as pltpu

hidden_dim = 69
layer_dim = 1
output_dim = 7

HP = 128      # per-gate hidden width, padded to one full vreg lane group
OP = 128      # padded FC output width (lane-dense final store)


def lstm_fc_kernel(x_ref, wih_ref, b_ref, whh_hbm, wfc_hbm, bfc_ref,
                   out_ref, xp_sc, whh_sc, wfc_sc, dma_sem):
    """LSTM recurrence over time + final FC, fully inside one kernel call.

    x_ref    : (T*Bp, D)      bf16  time-major, batch padded to Bp (VMEM)
    wih_ref  : (D, 4*HP)      bf16  gate order [i, f, o, g], lane-padded (VMEM)
    b_ref    : (1, 4*HP)      f32   bias_ih + bias_hh, lane-padded (VMEM)
    whh_hbm  : (HP, 4*HP)     bf16  HBM ref (manual DMA; rows >= H are zero)
    wfc_hbm  : (HP, OP)       bf16  HBM ref (manual DMA; rows>=H, cols>=O zero)
    bfc_ref  : (1, OP)        f32   (VMEM)
    out_ref  : (Bp, OP)       f32
    xp_sc    : (T*Bp, 4*HP)   f32   scratch: precomputed x projection
    whh_sc   : (HP, 4*HP)     bf16  scratch: W_hh landing buffer
    wfc_sc   : (HP, OP)       bf16  scratch: W_fc landing buffer
    dma_sem  : DMA semaphores (2,)
    """
    Bp = out_ref.shape[0]
    hp = whh_sc.shape[0]                 # == HP
    T = x_ref.shape[0] // Bp

    # --- kick off weight DMAs; they overlap the hoisted input projection ----
    whh_cp = pltpu.make_async_copy(whh_hbm, whh_sc, dma_sem.at[0])
    wfc_cp = pltpu.make_async_copy(wfc_hbm, wfc_sc, dma_sem.at[1])
    whh_cp.start()
    wfc_cp.start()

    # --- hoisted input projection (bias folded in), one big bf16 MXU matmul -
    xp_sc[...] = (jnp.dot(x_ref[...], wih_ref[...],
                          preferred_element_type=jnp.float32)
                  + b_ref[...])

    h = jnp.zeros((Bp, hp), jnp.float32)
    c = jnp.zeros((Bp, hp), jnp.float32)

    # W_hh only needed from step 0 onwards; W_fc only after the recurrence.
    whh_cp.wait()

    # --- serial recurrence, fully unrolled (T is a small static constant) ---
    for t in range(T):
        x_proj = xp_sc[t * Bp:(t + 1) * Bp, :]          # static, 8-aligned
        # bf16 operands, f32 accumulation; RHS sourced from VMEM each step
        # (no 32+ vreg materialization of W_hh on the serial path).
        gates = x_proj + jnp.dot(h.astype(jnp.bfloat16), whh_sc[...],
                                 preferred_element_type=jnp.float32)
        sig = jax.nn.sigmoid(gates[:, :3 * hp])         # [i | f | o] slab
        i_g = sig[:, 0 * hp:1 * hp]
        f_g = sig[:, 1 * hp:2 * hp]
        o_g = sig[:, 2 * hp:3 * hp]
        g_g = jnp.tanh(gates[:, 3 * hp:4 * hp])
        c = f_g * c + i_g * g_g
        h = o_g * jnp.tanh(c)

    # --- fc(out[:, -1, :]) on the padded, lane-dense layout -----------------
    wfc_cp.wait()
    out_ref[...] = (jnp.dot(h.astype(jnp.bfloat16), wfc_sc[...],
                            preferred_element_type=jnp.float32)
                    + bfc_ref[...]).astype(out_ref.dtype)


def _pack_params(w_ih, w_hh, b_ih, b_hh, w_fc, b_fc, H, O, D):
    """Repack PyTorch-layout LSTM/Linear params into padded right-multiply form.

    PyTorch gate row order is [i, f, g, o]; we repack to [i, f, o, g] so the
    sigmoid gates form one contiguous slab, each gate padded to HP lanes.
    Weights are returned in bf16 (MXU operands); biases stay f32 (added post-
    accumulation).
    """
    order = (0, 1, 3, 2)  # source gate index for packed slots [i, f, o, g]
    bias = (b_ih + b_hh).astype(jnp.float32)

    wih_p = jnp.zeros((D, 4 * HP), jnp.float32)
    whh_p = jnp.zeros((HP, 4 * HP), jnp.float32)
    b_p = jnp.zeros((1, 4 * HP), jnp.float32)
    for j, k in enumerate(order):
        wih_p = wih_p.at[:, j * HP:j * HP + H].set(
            w_ih[k * H:(k + 1) * H].T.astype(jnp.float32))
        whh_p = whh_p.at[:H, j * HP:j * HP + H].set(
            w_hh[k * H:(k + 1) * H].T.astype(jnp.float32))
        b_p = b_p.at[0, j * HP:j * HP + H].set(bias[k * H:(k + 1) * H])

    wfc_p = jnp.zeros((HP, OP), jnp.float32).at[:H, :O].set(
        w_fc.T.astype(jnp.float32))
    bfc_p = jnp.zeros((1, OP), jnp.float32).at[0, :O].set(
        b_fc.astype(jnp.float32))
    return (wih_p.astype(jnp.bfloat16), whh_p.astype(jnp.bfloat16), b_p,
            wfc_p.astype(jnp.bfloat16), bfc_p)


def rnn_forward(x, params):
    """x: (B, T, D) float32.  Returns (B, output_dim) float32."""
    w_ih, w_hh, b_ih, b_hh, w_fc, b_fc = params
    B, T, D = x.shape
    H = w_hh.shape[1]          # hidden_dim
    O = w_fc.shape[0]          # output_dim
    assert H <= HP and O <= OP

    Bp = max(8, ((B + 7) // 8) * 8)    # pad batch to a sublane multiple

    wih_p, whh_p, b_p, wfc_p, bfc_p = _pack_params(
        w_ih, w_hh, b_ih, b_hh, w_fc, b_fc, H, O, D)

    # time-major, batch-padded, flattened to 2-D for one big input projection
    x_tbd = jnp.transpose(x, (1, 0, 2)).astype(jnp.float32)        # (T, B, D)
    x_pad = jnp.zeros((T, Bp, D), jnp.float32).at[:, :B, :].set(x_tbd)
    x2d = x_pad.reshape(T * Bp, D).astype(jnp.bfloat16)

    grid_spec = pltpu.PrefetchScalarGridSpec(
        num_scalar_prefetch=0,
        grid=(1,),
        in_specs=[
            pl.BlockSpec((T * Bp, D), lambda i: (0, 0)),     # x (bf16)
            pl.BlockSpec((D, 4 * HP), lambda i: (0, 0)),     # W_ih (bf16)
            pl.BlockSpec((1, 4 * HP), lambda i: (0, 0)),     # bias (f32)
            pl.BlockSpec(memory_space=pl.ANY),               # W_hh (bf16, HBM)
            pl.BlockSpec(memory_space=pl.ANY),               # W_fc (bf16, HBM)
            pl.BlockSpec((1, OP), lambda i: (0, 0)),         # b_fc (f32)
        ],
        out_specs=pl.BlockSpec((Bp, OP), lambda i: (0, 0)),
        scratch_shapes=[
            pltpu.VMEM((T * Bp, 4 * HP), jnp.float32),   # hoisted x projection
            pltpu.VMEM((HP, 4 * HP), jnp.bfloat16),      # W_hh landing buffer
            pltpu.VMEM((HP, OP), jnp.bfloat16),          # W_fc landing buffer
            pltpu.SemaphoreType.DMA((2,)),
        ],
    )

    out_p = pl.pallas_call(
        lstm_fc_kernel,
        out_shape=jax.ShapeDtypeStruct((Bp, OP), jnp.float32),
        grid_spec=grid_spec,
        compiler_params=pltpu.CompilerParams(
            dimension_semantics=("arbitrary",)),
    )(x2d, wih_p, b_p, whh_p, wfc_p, bfc_p)

    return out_p[:B, :O]


def init_params(key, input_dim, H, O):
    """Deterministic init mirroring PyTorch LSTM/Linear parameter shapes."""
    k = jax.random.split(key, 6)
    s_lstm = 1.0 / jnp.sqrt(H)
    s_fc = 1.0 / jnp.sqrt(H)
    w_ih = jax.random.uniform(k[0], (4 * H, input_dim), jnp.float32,
                              -s_lstm, s_lstm)
    w_hh = jax.random.uniform(k[1], (4 * H, H), jnp.float32, -s_lstm, s_lstm)
    b_ih = jax.random.uniform(k[2], (4 * H,), jnp.float32, -s_lstm, s_lstm)
    b_hh = jax.random.uniform(k[3], (4 * H,), jnp.float32, -s_lstm, s_lstm)
    w_fc = jax.random.uniform(k[4], (O, H), jnp.float32, -s_fc, s_fc)
    b_fc = jax.random.uniform(k[5], (O,), jnp.float32, -s_fc, s_fc)
    return (w_ih, w_hh, b_ih, b_hh, w_fc, b_fc)


def rnn_reference(x, params):
    """Pure-JAX f32 reference of the same PyTorch forward (for verification)."""
    w_ih, w_hh, b_ih, b_hh, w_fc, b_fc = params
    B, T, D = x.shape
    H = w_hh.shape[1]
    h = jnp.zeros((B, H), jnp.float32)
    c = jnp.zeros((B, H), jnp.float32)

    def step(carry, x_t):
        h, c = carry
        gates = x_t @ w_ih.T + b_ih + h @ w_hh.T + b_hh
        i = jax.nn.sigmoid(gates[:, 0 * H:1 * H])
        f = jax.nn.sigmoid(gates[:, 1 * H:2 * H])
        g = jnp.tanh(gates[:, 2 * H:3 * H])
        o = jax.nn.sigmoid(gates[:, 3 * H:4 * H])
        c = f * c + i * g
        h = o * jnp.tanh(c)
        return (h, c), None

    (h, _), _ = lax.scan(step, (h, c), jnp.transpose(x, (1, 0, 2)))
    return h @ w_fc.T + b_fc


if __name__ == "__main__":
    B, T, D = 2, 8, 16     # batch, seq, input_dim
    H, O = hidden_dim, output_dim

    key = jax.random.PRNGKey(0)
    kx, kp = jax.random.split(key)
    x = jax.random.normal(kx, (B, T, D), jnp.float32)
    params = init_params(kp, D, H, O)

    out = rnn_forward(x, params)
    out = jax.block_until_ready(out)

    ref = rnn_reference(x, params)
    assert out.shape == (B, O)
    # bf16 MXU operands (f32 accumulation): loosened tolerance vs. f32 ref.
    assert jnp.allclose(out, ref, atol=2e-2, rtol=2e-2), (
        f"max err {jnp.max(jnp.abs(out - ref))}")

    print("KERNEL_OK")
</pallas_src>

<mosaic_0001>
module attributes {stable_mosaic.version = 11 : i64} {
  func.func @lstm_fc_kernel(%arg0: i32, %arg1: memref<64x16xbf16, #tpu.memory_space<vmem>>, %arg2: memref<16x512xbf16, #tpu.memory_space<vmem>>, %arg3: memref<1x512xf32, #tpu.memory_space<vmem>>, %arg4: memref<128x512xbf16, #tpu.memory_space<any>>, %arg5: memref<128x128xbf16, #tpu.memory_space<any>>, %arg6: memref<1x128xf32, #tpu.memory_space<vmem>>, %arg7: memref<8x128xf32, #tpu.memory_space<vmem>>, %arg8: memref<64x512xf32, #tpu.memory_space<vmem>>, %arg9: memref<128x512xbf16, #tpu.memory_space<vmem>>, %arg10: memref<128x128xbf16, #tpu.memory_space<vmem>>, %arg11: memref<2x!tpu.dma_semaphore, #tpu.memory_space<semaphore_mem>>) attributes {dimension_semantics = [#tpu.dimension_semantics<arbitrary>], iteration_bounds = array<i64: 1>, scalar_prefetch = 0 : i64, scratch_operands = 4 : i64, tpu.core_type = #tpu.core_type<tc>, window_params = [{pipeline_mode = #tpu.pipeline_mode<synchronous>, transform_indices = @transform_0, window_bounds = array<i64: 64, 16>}, {pipeline_mode = #tpu.pipeline_mode<synchronous>, transform_indices = @transform_1, window_bounds = array<i64: 16, 512>}, {pipeline_mode = #tpu.pipeline_mode<synchronous>, transform_indices = @transform_2, window_bounds = array<i64: 1, 512>}, {}, {}, {pipeline_mode = #tpu.pipeline_mode<synchronous>, transform_indices = @transform_5, window_bounds = array<i64: 1, 128>}, {pipeline_mode = #tpu.pipeline_mode<synchronous>, transform_indices = @transform_6, window_bounds = array<i64: 8, 128>}]} {
    %c0_i32 = arith.constant 0 : i32
    %0 = tpu.memref_slice %arg11[%c0_i32] : memref<2x!tpu.dma_semaphore, #tpu.memory_space<semaphore_mem>> -> memref<1x!tpu.dma_semaphore, #tpu.memory_space<semaphore_mem>>
    %1 = tpu.memref_squeeze %0 : memref<1x!tpu.dma_semaphore, #tpu.memory_space<semaphore_mem>> -> memref<!tpu.dma_semaphore, #tpu.memory_space<semaphore_mem>>
    tpu.enqueue_dma source(%arg4 : memref<128x512xbf16, #tpu.memory_space<any>>) target(%arg9 : memref<128x512xbf16, #tpu.memory_space<vmem>>) target_semaphore(%1 : memref<!tpu.dma_semaphore, #tpu.memory_space<semaphore_mem>>)
    %c1_i32 = arith.constant 1 : i32
    %2 = tpu.memref_slice %arg11[%c1_i32] : memref<2x!tpu.dma_semaphore, #tpu.memory_space<semaphore_mem>> -> memref<1x!tpu.dma_semaphore, #tpu.memory_space<semaphore_mem>>
    %3 = tpu.memref_squeeze %2 : memref<1x!tpu.dma_semaphore, #tpu.memory_space<semaphore_mem>> -> memref<!tpu.dma_semaphore, #tpu.memory_space<semaphore_mem>>
    tpu.enqueue_dma source(%arg5 : memref<128x128xbf16, #tpu.memory_space<any>>) target(%arg10 : memref<128x128xbf16, #tpu.memory_space<vmem>>) target_semaphore(%3 : memref<!tpu.dma_semaphore, #tpu.memory_space<semaphore_mem>>)
    %c0 = arith.constant 0 : index
    %c0_0 = arith.constant 0 : index
    %4 = vector.load %arg1[%c0, %c0_0] : memref<64x16xbf16, #tpu.memory_space<vmem>>, vector<64x16xbf16>
    %c0_1 = arith.constant 0 : index
    %c0_2 = arith.constant 0 : index
    %5 = vector.load %arg2[%c0_1, %c0_2] : memref<16x512xbf16, #tpu.memory_space<vmem>>, vector<16x512xbf16>
    %cst = arith.constant dense<0.000000e+00> : vector<64x512xf32>
    %6 = tpu.matmul %4, %5, %cst {dimension_numbers = #tpu.dot_dimension_numbers<[1], [0], [0], [1], [0, 0, 1, 1], [], []>} : vector<64x16xbf16>, vector<16x512xbf16>, vector<64x512xf32> -> vector<64x512xf32>
    %c0_3 = arith.constant 0 : index
    %c0_4 = arith.constant 0 : index
    %7 = vector.load %arg3[%c0_3, %c0_4] : memref<1x512xf32, #tpu.memory_space<vmem>>, vector<1x512xf32>
    %8 = vector.broadcast %7 : vector<1x512xf32> to vector<64x512xf32>
    %9 = arith.addf %6, %8 : vector<64x512xf32>
    %c0_5 = arith.constant 0 : index
    %c0_6 = arith.constant 0 : index
    %10 = vector.load %arg8[%c0_5, %c0_6] : memref<64x512xf32, #tpu.memory_space<vmem>>, vector<64x512xf32>
    tpu.vector_store %arg8[%c0_5, %c0_6], %9 {strides = array<i32>} : memref<64x512xf32, #tpu.memory_space<vmem>>, vector<64x512xf32>,
    %cst_7 = arith.constant 0.000000e+00 : f32
    %11 = vector.broadcast %cst_7 : f32 to vector<8x128xf32>
    %cst_8 = arith.constant 0.000000e+00 : f32
    %12 = vector.broadcast %cst_8 : f32 to vector<8x128xf32>
    %c0_i32_9 = arith.constant 0 : i32
    %13 = tpu.memref_slice %arg11[%c0_i32_9] : memref<2x!tpu.dma_semaphore, #tpu.memory_space<semaphore_mem>> -> memref<1x!tpu.dma_semaphore, #tpu.memory_space<semaphore_mem>>
    %14 = tpu.memref_squeeze %13 : memref<1x!tpu.dma_semaphore, #tpu.memory_space<semaphore_mem>> -> memref<!tpu.dma_semaphore, #tpu.memory_space<semaphore_mem>>
    tpu.wait_dma2 semaphore(%14 : memref<!tpu.dma_semaphore, #tpu.memory_space<semaphore_mem>>) src(%arg4 : memref<128x512xbf16, #tpu.memory_space<any>>) dst(%arg9 : memref<128x512xbf16, #tpu.memory_space<vmem>>)
    %c0_10 = arith.constant 0 : index
    %c0_11 = arith.constant 0 : index
    %15 = vector.load %arg8[%c0_10, %c0_11] : memref<64x512xf32, #tpu.memory_space<vmem>>, vector<8x512xf32>
    %16 = arith.truncf %11 : vector<8x128xf32> to vector<8x128xbf16>
    %c0_12 = arith.constant 0 : index
    %c0_13 = arith.constant 0 : index
    %17 = vector.load %arg9[%c0_12, %c0_13] : memref<128x512xbf16, #tpu.memory_space<vmem>>, vector<128x512xbf16>
    %cst_14 = arith.constant dense<0.000000e+00> : vector<8x512xf32>
    %18 = tpu.matmul %16, %17, %cst_14 {dimension_numbers = #tpu.dot_dimension_numbers<[1], [0], [0], [1], [0, 0, 1, 1], [], []>} : vector<8x128xbf16>, vector<128x512xbf16>, vector<8x512xf32> -> vector<8x512xf32>
    %19 = arith.addf %15, %18 : vector<8x512xf32>
    %20 = vector.extract_strided_slice %19 {offsets = [0, 0], sizes = [8, 384], strides = [1, 1]} : vector<8x512xf32> to vector<8x384xf32>
    %21 = arith.negf %20 : vector<8x384xf32>
    %22 = math.exp %21 : vector<8x384xf32>
    %cst_15 = arith.constant 1.000000e+00 : f32
    %23 = vector.broadcast %cst_15 : f32 to vector<8x384xf32>
    %24 = arith.addf %23, %22 : vector<8x384xf32>
    %25 = arith.divf %23, %24 : vector<8x384xf32>
    %26 = vector.extract_strided_slice %25 {offsets = [0, 0], sizes = [8, 128], strides = [1, 1]} : vector<8x384xf32> to vector<8x128xf32>
    %27 = vector.extract_strided_slice %25 {offsets = [0, 128], sizes = [8, 128], strides = [1, 1]} : vector<8x384xf32> to vector<8x128xf32>
    %28 = vector.extract_strided_slice %25 {offsets = [0, 256], sizes = [8, 128], strides = [1, 1]} : vector<8x384xf32> to vector<8x128xf32>
    %29 = vector.extract_strided_slice %19 {offsets = [0, 384], sizes = [8, 128], strides = [1, 1]} : vector<8x512xf32> to vector<8x128xf32>
    %30 = math.tanh %29 : vector<8x128xf32>
    %31 = arith.mulf %27, %12 : vector<8x128xf32>
    %32 = arith.mulf %26, %30 : vector<8x128xf32>
    %33 = arith.addf %31, %32 : vector<8x128xf32>
    %34 = math.tanh %33 : vector<8x128xf32>
    %35 = arith.mulf %28, %34 : vector<8x128xf32>
    %c8 = arith.constant 8 : index
    %c0_16 = arith.constant 0 : index
    %36 = vector.load %arg8[%c8, %c0_16] : memref<64x512xf32, #tpu.memory_space<vmem>>, vector<8x512xf32>
    %37 = arith.truncf %35 : vector<8x128xf32> to vector<8x128xbf16>
    %c0_17 = arith.constant 0 : index
    %c0_18 = arith.constant 0 : index
    %38 = vector.load %arg9[%c0_17, %c0_18] : memref<128x512xbf16, #tpu.memory_space<vmem>>, vector<128x512xbf16>
    %cst_19 = arith.constant dense<0.000000e+00> : vector<8x512xf32>
    %39 = tpu.matmul %37, %38, %cst_19 {dimension_numbers = #tpu.dot_dimension_numbers<[1], [0], [0], [1], [0, 0, 1, 1], [], []>} : vector<8x128xbf16>, vector<128x512xbf16>, vector<8x512xf32> -> vector<8x512xf32>
    %40 = arith.addf %36, %39 : vector<8x512xf32>
    %41 = vector.extract_strided_slice %40 {offsets = [0, 0], sizes = [8, 384], strides = [1, 1]} : vector<8x512xf32> to vector<8x384xf32>
    %42 = arith.negf %41 : vector<8x384xf32>
    %43 = math.exp %42 : vector<8x384xf32>
    %cst_20 = arith.constant 1.000000e+00 : f32
    %44 = vector.broadcast %cst_20 : f32 to vector<8x384xf32>
    %45 = arith.addf %44, %43 : vector<8x384xf32>
    %46 = arith.divf %44, %45 : vector<8x384xf32>
    %47 = vector.extract_strided_slice %46 {offsets = [0, 0], sizes = [8, 128], strides = [1, 1]} : vector<8x384xf32> to vector<8x128xf32>
    %48 = vector.extract_strided_slice %46 {offsets = [0, 128], sizes = [8, 128], strides = [1, 1]} : vector<8x384xf32> to vector<8x128xf32>
    %49 = vector.extract_strided_slice %46 {offsets = [0, 256], sizes = [8, 128], strides = [1, 1]} : vector<8x384xf32> to vector<8x128xf32>
    %50 = vector.extract_strided_slice %40 {offsets = [0, 384], sizes = [8, 128], strides = [1, 1]} : vector<8x512xf32> to vector<8x128xf32>
    %51 = math.tanh %50 : vector<8x128xf32>
    %52 = arith.mulf %48, %33 : vector<8x128xf32>
    %53 = arith.mulf %47, %51 : vector<8x128xf32>
    %54 = arith.addf %52, %53 : vector<8x128xf32>
    %55 = math.tanh %54 : vector<8x128xf32>
    %56 = arith.mulf %49, %55 : vector<8x128xf32>
    %c16 = arith.constant 16 : index
    %c0_21 = arith.constant 0 : index
    %57 = vector.load %arg8[%c16, %c0_21] : memref<64x512xf32, #tpu.memory_space<vmem>>, vector<8x512xf32>
    %58 = arith.truncf %56 : vector<8x128xf32> to vector<8x128xbf16>
    %c0_22 = arith.constant 0 : index
    %c0_23 = arith.constant 0 : index
    %59 = vector.load %arg9[%c0_22, %c0_23] : memref<128x512xbf16, #tpu.memory_space<vmem>>, vector<128x512xbf16>
    %cst_24 = arith.constant dense<0.000000e+00> : vector<8x512xf32>
    %60 = tpu.matmul %58, %59, %cst_24 {dimension_numbers = #tpu.dot_dimension_numbers<[1], [0], [0], [1], [0, 0, 1, 1], [], []>} : vector<8x128xbf16>, vector<128x512xbf16>, vector<8x512xf32> -> vector<8x512xf32>
    %61 = arith.addf %57, %60 : vector<8x512xf32>
    %62 = vector.extract_strided_slice %61 {offsets = [0, 0], sizes = [8, 384], strides = [1, 1]} : vector<8x512xf32> to vector<8x384xf32>
    %63 = arith.negf %62 : vector<8x384xf32>
    %64 = math.exp %63 : vector<8x384xf32>
    %cst_25 = arith.constant 1.000000e+00 : f32
    %65 = vector.broadcast %cst_25 : f32 to vector<8x384xf32>
    %66 = arith.addf %65, %64 : vector<8x384xf32>
    %67 = arith.divf %65, %66 : vector<8x384xf32>
    %68 = vector.extract_strided_slice %67 {offsets = [0, 0], sizes = [8, 128], strides = [1, 1]} : vector<8x384xf32> to vector<8x128xf32>
    %69 = vector.extract_strided_slice %67 {offsets = [0, 128], sizes = [8, 128], strides = [1, 1]} : vector<8x384xf32> to vector<8x128xf32>
    %70 = vector.extract_strided_slice %67 {offsets = [0, 256], sizes = [8, 128], strides = [1, 1]} : vector<8x384xf32> to vector<8x128xf32>
    %71 = vector.extract_strided_slice %61 {offsets = [0, 384], sizes = [8, 128], strides = [1, 1]} : vector<8x512xf32> to vector<8x128xf32>
    %72 = math.tanh %71 : vector<8x128xf32>
    %73 = arith.mulf %69, %54 : vector<8x128xf32>
    %74 = arith.mulf %68, %72 : vector<8x128xf32>
    %75 = arith.addf %73, %74 : vector<8x128xf32>
    %76 = math.tanh %75 : vector<8x128xf32>
    %77 = arith.mulf %70, %76 : vector<8x128xf32>
    %c24 = arith.constant 24 : index
    %c0_26 = arith.constant 0 : index
    %78 = vector.load %arg8[%c24, %c0_26] : memref<64x512xf32, #tpu.memory_space<vmem>>, vector<8x512xf32>
    %79 = arith.truncf %77 : vector<8x128xf32> to vector<8x128xbf16>
    %c0_27 = arith.constant 0 : index
    %c0_28 = arith.constant 0 : index
    %80 = vector.load %arg9[%c0_27, %c0_28] : memref<128x512xbf16, #tpu.memory_space<vmem>>, vector<128x512xbf16>
    %cst_29 = arith.constant dense<0.000000e+00> : vector<8x512xf32>
    %81 = tpu.matmul %79, %80, %cst_29 {dimension_numbers = #tpu.dot_dimension_numbers<[1], [0], [0], [1], [0, 0, 1, 1], [], []>} : vector<8x128xbf16>, vector<128x512xbf16>, vector<8x512xf32> -> vector<8x512xf32>
    %82 = arith.addf %78, %81 : vector<8x512xf32>
    %83 = vector.extract_strided_slice %82 {offsets = [0, 0], sizes = [8, 384], strides = [1, 1]} : vector<8x512xf32> to vector<8x384xf32>
    %84 = arith.negf %83 : vector<8x384xf32>
    %85 = math.exp %84 : vector<8x384xf32>
    %cst_30 = arith.constant 1.000000e+00 : f32
    %86 = vector.broadcast %cst_30 : f32 to vector<8x384xf32>
    %87 = arith.addf %86, %85 : vector<8x384xf32>
    %88 = arith.divf %86, %87 : vector<8x384xf32>
    %89 = vector.extract_strided_slice %88 {offsets = [0, 0], sizes = [8, 128], strides = [1, 1]} : vector<8x384xf32> to vector<8x128xf32>
    %90 = vector.extract_strided_slice %88 {offsets = [0, 128], sizes = [8, 128], strides = [1, 1]} : vector<8x384xf32> to vector<8x128xf32>
    %91 = vector.extract_strided_slice %88 {offsets = [0, 256], sizes = [8, 128], strides = [1, 1]} : vector<8x384xf32> to vector<8x128xf32>
    %92 = vector.extract_strided_slice %82 {offsets = [0, 384], sizes = [8, 128], strides = [1, 1]} : vector<8x512xf32> to vector<8x128xf32>
    %93 = math.tanh %92 : vector<8x128xf32>
    %94 = arith.mulf %90, %75 : vector<8x128xf32>
    %95 = arith.mulf %89, %93 : vector<8x128xf32>
    %96 = arith.addf %94, %95 : vector<8x128xf32>
    %97 = math.tanh %96 : vector<8x128xf32>
    %98 = arith.mulf %91, %97 : vector<8x128xf32>
    %c32 = arith.constant 32 : index
    %c0_31 = arith.constant 0 : index
    %99 = vector.load %arg8[%c32, %c0_31] : memref<64x512xf32, #tpu.memory_space<vmem>>, vector<8x512xf32>
    %100 = arith.truncf %98 : vector<8x128xf32> to vector<8x128xbf16>
    %c0_32 = arith.constant 0 : index
    %c0_33 = arith.constant 0 : index
    %101 = vector.load %arg9[%c0_32, %c0_33] : memref<128x512xbf16, #tpu.memory_space<vmem>>, vector<128x512xbf16>
    %cst_34 = arith.constant dense<0.000000e+00> : vector<8x512xf32>
    %102 = tpu.matmul %100, %101, %cst_34 {dimension_numbers = #tpu.dot_dimension_numbers<[1], [0], [0], [1], [0, 0, 1, 1], [], []>} : vector<8x128xbf16>, vector<128x512xbf16>, vector<8x512xf32> -> vector<8x512xf32>
    %103 = arith.addf %99, %102 : vector<8x512xf32>
    %104 = vector.extract_strided_slice %103 {offsets = [0, 0], sizes = [8, 384], strides = [1, 1]} : vector<8x512xf32> to vector<8x384xf32>
    %105 = arith.negf %104 : vector<8x384xf32>
    %106 = math.exp %105 : vector<8x384xf32>
    %cst_35 = arith.constant 1.000000e+00 : f32
    %107 = vector.broadcast %cst_35 : f32 to vector<8x384xf32>
    %108 = arith.addf %107, %106 : vector<8x384xf32>
    %109 = arith.divf %107, %108 : vector<8x384xf32>
    %110 = vector.extract_strided_slice %109 {offsets = [0, 0], sizes = [8, 128], strides = [1, 1]} : vector<8x384xf32> to vector<8x128xf32>
    %111 = vector.extract_strided_slice %109 {offsets = [0, 128], sizes = [8, 128], strides = [1, 1]} : vector<8x384xf32> to vector<8x128xf32>
    %112 = vector.extract_strided_slice %109 {offsets = [0, 256], sizes = [8, 128], strides = [1, 1]} : vector<8x384xf32> to vector<8x128xf32>
    %113 = vector.extract_strided_slice %103 {offsets = [0, 384], sizes = [8, 128], strides = [1, 1]} : vector<8x512xf32> to vector<8x128xf32>
    %114 = math.tanh %113 : vector<8x128xf32>
    %115 = arith.mulf %111, %96 : vector<8x128xf32>
    %116 = arith.mulf %110, %114 : vector<8x128xf32>
    %117 = arith.addf %115, %116 : vector<8x128xf32>
    %118 = math.tanh %117 : vector<8x128xf32>
    %119 = arith.mulf %112, %118 : vector<8x128xf32>
    %c40 = arith.constant 40 : index
    %c0_36 = arith.constant 0 : index
    %120 = vector.load %arg8[%c40, %c0_36] : memref<64x512xf32, #tpu.memory_space<vmem>>, vector<8x512xf32>
    %121 = arith.truncf %119 : vector<8x128xf32> to vector<8x128xbf16>
    %c0_37 = arith.constant 0 : index
    %c0_38 = arith.constant 0 : index
    %122 = vector.load %arg9[%c0_37, %c0_38] : memref<128x512xbf16, #tpu.memory_space<vmem>>, vector<128x512xbf16>
    %cst_39 = arith.constant dense<0.000000e+00> : vector<8x512xf32>
    %123 = tpu.matmul %121, %122, %cst_39 {dimension_numbers = #tpu.dot_dimension_numbers<[1], [0], [0], [1], [0, 0, 1, 1], [], []>} : vector<8x128xbf16>, vector<128x512xbf16>, vector<8x512xf32> -> vector<8x512xf32>
    %124 = arith.addf %120, %123 : vector<8x512xf32>
    %125 = vector.extract_strided_slice %124 {offsets = [0, 0], sizes = [8, 384], strides = [1, 1]} : vector<8x512xf32> to vector<8x384xf32>
    %126 = arith.negf %125 : vector<8x384xf32>
    %127 = math.exp %126 : vector<8x384xf32>
    %cst_40 = arith.constant 1.000000e+00 : f32
    %128 = vector.broadcast %cst_40 : f32 to vector<8x384xf32>
    %129 = arith.addf %128, %127 : vector<8x384xf32>
    %130 = arith.divf %128, %129 : vector<8x384xf32>
    %131 = vector.extract_strided_slice %130 {offsets = [0, 0], sizes = [8, 128], strides = [1, 1]} : vector<8x384xf32> to vector<8x128xf32>
    %132 = vector.extract_strided_slice %130 {offsets = [0, 128], sizes = [8, 128], strides = [1, 1]} : vector<8x384xf32> to vector<8x128xf32>
    %133 = vector.extract_strided_slice %130 {offsets = [0, 256], sizes = [8, 128], strides = [1, 1]} : vector<8x384xf32> to vector<8x128xf32>
    %134 = vector.extract_strided_slice %124 {offsets = [0, 384], sizes = [8, 128], strides = [1, 1]} : vector<8x512xf32> to vector<8x128xf32>
    %135 = math.tanh %134 : vector<8x128xf32>
    %136 = arith.mulf %132, %117 : vector<8x128xf32>
    %137 = arith.mulf %131, %135 : vector<8x128xf32>
    %138 = arith.addf %136, %137 : vector<8x128xf32>
    %139 = math.tanh %138 : vector<8x128xf32>
    %140 = arith.mulf %133, %139 : vector<8x128xf32>
    %c48 = arith.constant 48 : index
    %c0_41 = arith.constant 0 : index
    %141 = vector.load %arg8[%c48, %c0_41] : memref<64x512xf32, #tpu.memory_space<vmem>>, vector<8x512xf32>
    %142 = arith.truncf %140 : vector<8x128xf32> to vector<8x128xbf16>
    %c0_42 = arith.constant 0 : index
    %c0_43 = arith.constant 0 : index
    %143 = vector.load %arg9[%c0_42, %c0_43] : memref<128x512xbf16, #tpu.memory_space<vmem>>, vector<128x512xbf16>
    %cst_44 = arith.constant dense<0.000000e+00> : vector<8x512xf32>
    %144 = tpu.matmul %142, %143, %cst_44 {dimension_numbers = #tpu.dot_dimension_numbers<[1], [0], [0], [1], [0, 0, 1, 1], [], []>} : vector<8x128xbf16>, vector<128x512xbf16>, vector<8x512xf32> -> vector<8x512xf32>
    %145 = arith.addf %141, %144 : vector<8x512xf32>
    %146 = vector.extract_strided_slice %145 {offsets = [0, 0], sizes = [8, 384], strides = [1, 1]} : vector<8x512xf32> to vector<8x384xf32>
    %147 = arith.negf %146 : vector<8x384xf32>
    %148 = math.exp %147 : vector<8x384xf32>
    %cst_45 = arith.constant 1.000000e+00 : f32
    %149 = vector.broadcast %cst_45 : f32 to vector<8x384xf32>
    %150 = arith.addf %149, %148 : vector<8x384xf32>
    %151 = arith.divf %149, %150 : vector<8x384xf32>
    %152 = vector.extract_strided_slice %151 {offsets = [0, 0], sizes = [8, 128], strides = [1, 1]} : vector<8x384xf32> to vector<8x128xf32>
    %153 = vector.extract_strided_slice %151 {offsets = [0, 128], sizes = [8, 128], strides = [1, 1]} : vector<8x384xf32> to vector<8x128xf32>
    %154 = vector.extract_strided_slice %151 {offsets = [0, 256], sizes = [8, 128], strides = [1, 1]} : vector<8x384xf32> to vector<8x128xf32>
    %155 = vector.extract_strided_slice %145 {offsets = [0, 384], sizes = [8, 128], strides = [1, 1]} : vector<8x512xf32> to vector<8x128xf32>
    %156 = math.tanh %155 : vector<8x128xf32>
    %157 = arith.mulf %153, %138 : vector<8x128xf32>
    %158 = arith.mulf %152, %156 : vector<8x128xf32>
    %159 = arith.addf %157, %158 : vector<8x128xf32>
    %160 = math.tanh %159 : vector<8x128xf32>
    %161 = arith.mulf %154, %160 : vector<8x128xf32>
    %c56 = arith.constant 56 : index
    %c0_46 = arith.constant 0 : index
    %162 = vector.load %arg8[%c56, %c0_46] : memref<64x512xf32, #tpu.memory_space<vmem>>, vector<8x512xf32>
    %163 = arith.truncf %161 : vector<8x128xf32> to vector<8x128xbf16>
    %c0_47 = arith.constant 0 : index
    %c0_48 = arith.constant 0 : index
    %164 = vector.load %arg9[%c0_47, %c0_48] : memref<128x512xbf16, #tpu.memory_space<vmem>>, vector<128x512xbf16>
    %cst_49 = arith.constant dense<0.000000e+00> : vector<8x512xf32>
    %165 = tpu.matmul %163, %164, %cst_49 {dimension_numbers = #tpu.dot_dimension_numbers<[1], [0], [0], [1], [0, 0, 1, 1], [], []>} : vector<8x128xbf16>, vector<128x512xbf16>, vector<8x512xf32> -> vector<8x512xf32>
    %166 = arith.addf %162, %165 : vector<8x512xf32>
    %167 = vector.extract_strided_slice %166 {offsets = [0, 0], sizes = [8, 384], strides = [1, 1]} : vector<8x512xf32> to vector<8x384xf32>
    %168 = arith.negf %167 : vector<8x384xf32>
    %169 = math.exp %168 : vector<8x384xf32>
    %cst_50 = arith.constant 1.000000e+00 : f32
    %170 = vector.broadcast %cst_50 : f32 to vector<8x384xf32>
    %171 = arith.addf %170, %169 : vector<8x384xf32>
    %172 = arith.divf %170, %171 : vector<8x384xf32>
    %173 = vector.extract_strided_slice %172 {offsets = [0, 0], sizes = [8, 128], strides = [1, 1]} : vector<8x384xf32> to vector<8x128xf32>
    %174 = vector.extract_strided_slice %172 {offsets = [0, 128], sizes = [8, 128], strides = [1, 1]} : vector<8x384xf32> to vector<8x128xf32>
    %175 = vector.extract_strided_slice %172 {offsets = [0, 256], sizes = [8, 128], strides = [1, 1]} : vector<8x384xf32> to vector<8x128xf32>
    %176 = vector.extract_strided_slice %166 {offsets = [0, 384], sizes = [8, 128], strides = [1, 1]} : vector<8x512xf32> to vector<8x128xf32>
    %177 = math.tanh %176 : vector<8x128xf32>
    %178 = arith.mulf %174, %159 : vector<8x128xf32>
    %179 = arith.mulf %173, %177 : vector<8x128xf32>
    %180 = arith.addf %178, %179 : vector<8x128xf32>
    %181 = math.tanh %180 : vector<8x128xf32>
    %182 = arith.mulf %175, %181 : vector<8x128xf32>
    %c1_i32_51 = arith.constant 1 : i32
    %183 = tpu.memref_slice %arg11[%c1_i32_51] : memref<2x!tpu.dma_semaphore, #tpu.memory_space<semaphore_mem>> -> memref<1x!tpu.dma_semaphore, #tpu.memory_space<semaphore_mem>>
    %184 = tpu.memref_squeeze %183 : memref<1x!tpu.dma_semaphore, #tpu.memory_space<semaphore_mem>> -> memref<!tpu.dma_semaphore, #tpu.memory_space<semaphore_mem>>
    tpu.wait_dma2 semaphore(%184 : memref<!tpu.dma_semaphore, #tpu.memory_space<semaphore_mem>>) src(%arg5 : memref<128x128xbf16, #tpu.memory_space<any>>) dst(%arg10 : memref<128x128xbf16, #tpu.memory_space<vmem>>)
    %185 = arith.truncf %182 : vector<8x128xf32> to vector<8x128xbf16>
    %c0_52 = arith.constant 0 : index
    %c0_53 = arith.constant 0 : index
    %186 = vector.load %arg10[%c0_52, %c0_53] : memref<128x128xbf16, #tpu.memory_space<vmem>>, vector<128x128xbf16>
    %cst_54 = arith.constant dense<0.000000e+00> : vector<8x128xf32>
    %187 = tpu.matmul %185, %186, %cst_54 {dimension_numbers = #tpu.dot_dimension_numbers<[1], [0], [0], [1], [0, 0, 1, 1], [], []>} : vector<8x128xbf16>, vector<128x128xbf16>, vector<8x128xf32> -> vector<8x128xf32>
    %c0_55 = arith.constant 0 : index
    %c0_56 = arith.constant 0 : index
    %188 = vector.load %arg6[%c0_55, %c0_56] : memref<1x128xf32, #tpu.memory_space<vmem>>, vector<1x128xf32>
    %189 = vector.broadcast %188 : vector<1x128xf32> to vector<8x128xf32>
    %190 = arith.addf %187, %189 : vector<8x128xf32>
    %c0_57 = arith.constant 0 : index
    %c0_58 = arith.constant 0 : index
    %191 = vector.load %arg7[%c0_57, %c0_58] : memref<8x128xf32, #tpu.memory_space<vmem>>, vector<8x128xf32>
    tpu.vector_store %arg7[%c0_57, %c0_58], %190 {strides = array<i32>} : memref<8x128xf32, #tpu.memory_space<vmem>>, vector<8x128xf32>,
    return
  }
  func.func @transform_0(%arg0: i32) -> (i32, i32) {
    %c0_i32 = arith.constant 0 : i32
    %c0_i32_0 = arith.constant 0 : i32
    %c0_i32_1 = arith.constant 0 : i32
    return %c0_i32, %c0_i32_0 : i32, i32
  }
  func.func @transform_1(%arg0: i32) -> (i32, i32) {
    %c0_i32 = arith.constant 0 : i32
    %c0_i32_0 = arith.constant 0 : i32
    %c0_i32_1 = arith.constant 0 : i32
    return %c0_i32, %c0_i32_0 : i32, i32
  }
  func.func @transform_2(%arg0: i32) -> (i32, i32) {
    %c0_i32 = arith.constant 0 : i32
    %c0_i32_0 = arith.constant 0 : i32
    %c0_i32_1 = arith.constant 0 : i32
    return %c0_i32, %c0_i32_0 : i32, i32
  }
  func.func @transform_5(%arg0: i32) -> (i32, i32) {
    %c0_i32 = arith.constant 0 : i32
    %c0_i32_0 = arith.constant 0 : i32
    %c0_i32_1 = arith.constant 0 : i32
    return %c0_i32, %c0_i32_0 : i32, i32
  }
  func.func @transform_6(%arg0: i32) -> (i32, i32) {
    %c0_i32 = arith.constant 0 : i32
    %c0_i32_0 = arith.constant 0 : i32
    %c0_i32_1 = arith.constant 0 : i32
    return %c0_i32, %c0_i32_0 : i32, i32
  }
}

</mosaic_0001>

<llo_original>
// kernel: tpu_custom_call.1
$region0: #{tpu_custom_call.1}
  #allocation0 [shape = 'u32[]', space=smem, size = 0x4, offset = 0x4, fixed_abs, tag = 'smem constant byte address 0x4 - core index']
  #allocation1 [shape = 'u32[144,128]{1,0:T(1,128)}', space=vmem, size = 0x12000, scoped, tag = 'internal scratch']
  #allocation2 [shape = 'f32[64,512]{1,0:T(8,128)}', space=vmem, size = 0x20000, scoped, tag = 'scratch operand']
  #allocation3 [shape = 'bf16[128,512]{1,0:T(16,128)(2,1)}', space=vmem, size = 0x20000, scoped, tag = 'scratch operand']
  #allocation4 [shape = 'bf16[128,128]{1,0:T(16,128)(2,1)}', space=vmem, size = 0x8000, scoped, tag = 'scratch operand']
  #allocation5 [shape = 's32[2]{0}', space=sflag, size = 0x8, scoped, tag = 'scratch operand']
  #allocation8 [shape = 's32[]', space=sflag, size = 0x4, offset = 0, fixed_abs, tag = 'sflag constant byte address 0x0 - dummy sync flag']
  #allocation10 [shape = 's32[]', space=sflag, size = 0x4, offset = 0, fixed_abs, tag = 'sflag constant byte address 0x0 - dummy sync flag']
  #allocation11 [shape = 's32[]', space=sflag, size = 0x4, offset = 0, fixed_abs, tag = 'sflag constant byte address 0x0 - dummy sync flag']
  #allocation12 [shape = 'u32[]', space=smem, size = 0x4, offset = 0x44, fixed_abs, tag = 'smem constant byte address 0x44 - assertion arg 0']
  #allocation13 [shape = 'u32[]', space=smem, size = 0x4, offset = 0x48, fixed_abs, tag = 'smem constant byte address 0x48 - assertion arg 1']
  %s0 = inlined_call_operand.vmem [shape: bf16[64,16], index: 0, kind: input, shape index: {}]
  %s1 = inlined_call_operand.vmem [shape: bf16[16,512], index: 1, kind: input, shape index: {}]
  %s2 = inlined_call_operand.vmem [shape: f32[1,512], index: 2, kind: input, shape index: {}]
  %s3 = inlined_call_operand.hbm [shape: bf16[128,512], index: 3, kind: input, shape index: {}]
  %s4 = inlined_call_operand.hbm [shape: bf16[128,128], index: 4, kind: input, shape index: {}]
  %s5 = inlined_call_operand.vmem [shape: f32[1,128], index: 5, kind: input, shape index: {}]
  %s6 = inlined_call_operand.hbm [shape: f32[8,128], index: 6, kind: output, shape index: {}]
  %s7 = sld [smem:[#allocation0]]
  $region30: #{tpu_custom_call.1} parent=0
    _
  %s9 = ssub.s32 1, %s7
  %s10 = scalar_select 0, %s9, %s7
  $region1: #{tpu_custom_call.1} parent=0
    #allocation6 [shape = 'u8[4096]{0}', space=vmem, size = 0x1000, scoped, tag = 'output window, operand 0, single buffered']
    #allocation7 [shape = 's32[1]{0}', space=sflag, size = 0x4, scoped, tag = 'scoped memory for tpu_custom_call.1']
    #allocation9 [shape = 'u32[9]{0}', space=smem, size = 0x24, scoped, tag = 'DMA stride descriptor']
    %11 = vsyncpa [#allocation7], 0
    // Predicated region
    $region2: #{tpu_custom_call.1} parent=1 // pred_check
      _
    $region3: #{tpu_custom_call.1} parent=1 // pred_check_branch
      %13 = sbr.rel (0) target = $region5
    $region4: #{tpu_custom_call.1} parent=1 // pred_region
      _
    $region5: #{tpu_custom_call.1} parent=1 // pred_fallthru
      _
    // Predicated region
    $region6: #{tpu_custom_call.1} parent=1 // pred_check
      _
    $region7: #{tpu_custom_call.1} parent=1 // pred_check_branch
      %15 = sbr.rel (0) target = $region9
    $region8: #{tpu_custom_call.1} parent=1 // pred_region
      _
    $region9: #{tpu_custom_call.1} parent=1 // pred_fallthru
      _
    // Predicated region
    $region10: #{tpu_custom_call.1} parent=1 // pred_check
      _
    $region11: #{tpu_custom_call.1} parent=1 // pred_check_branch
      %17 = sbr.rel (0) target = $region13
    $region12: #{tpu_custom_call.1} parent=1 // pred_region
      _
    $region13: #{tpu_custom_call.1} parent=1 // pred_fallthru
      _
    // Predicated region
    $region14: #{tpu_custom_call.1} parent=1 // pred_check
      _
    $region15: #{tpu_custom_call.1} parent=1 // pred_check_branch
      %19 = sbr.rel (0) target = $region17
    $region16: #{tpu_custom_call.1} parent=1 // pred_region
      _
    $region17: #{tpu_custom_call.1} parent=1 // pred_fallthru
      _
    %s22 = sshll.u32 1, 14
    %s23 = sxor.u32 4294967295, %s22
    %s25 = sld [smem:[#allocation0]]
    %s26 = sadd.s32 2, %s25
    %s28 = sshll.u32 7, 26
    %s29 = sxor.u32 4294967295, %s28
    %s30 = sand.u32 0, %s29
    %s31 = sshll.u32 %s26, 26
    %s32 = sor.u32 %s30, %s31
    %s33 = sshll.u32 [#allocation3], 4
    %s34 = int_to_ptr.vmem [resolvable:$true] %s33
    %37 = sst [smem:[#allocation9]] 512
    %s38 = scalar_lea.smem [#allocation9], 1
    %39 = sst [smem:[%s38]] 512
    %s40 = scalar_lea.smem [#allocation9], 2
    %41 = sst [smem:[%s40]] 4
    %s42 = scalar_lea.smem [#allocation9], 3
    %43 = sst [smem:[%s42]] 64
    %s44 = scalar_lea.smem [#allocation9], 4
    %45 = sst [smem:[%s44]] 128
    %s46 = scalar_lea.smem [#allocation9], 5
    %47 = sst [smem:[%s46]] 2
    %s48 = scalar_lea.smem [#allocation9], 6
    %49 = sst [smem:[%s48]] 256
    %s50 = scalar_lea.smem [#allocation9], 7
    %51 = sst [smem:[%s50]] 64
    %s52 = scalar_lea.smem [#allocation9], 8
    %53 = sst [smem:[%s52]] 4
    %55 = dma.general %s3, 4096, %s34, [#allocation5], [#allocation8], [#allocation9], %s32, 0
    %s56 = scalar_lea.sflag [#allocation5], 1
    // Predicated region
    $region18: #{tpu_custom_call.1} parent=1 // pred_check
      _
    $region19: #{tpu_custom_call.1} parent=1 // pred_check_branch
      %58 = sbr.rel target = $region21
    $region20: #{tpu_custom_call.1} parent=1 // pred_region
      %59 = sst [smem:[#allocation12]] [#allocation11]
      %60 = sst [smem:[#allocation13]] [#allocation10]
    $region21: #{tpu_custom_call.1} parent=1 // pred_fallthru
      _
    %62 = shalt.err (0)
    %s64 = sshll.u32 [#allocation4], 4
    %s65 = int_to_ptr.vmem [resolvable:$true] %s64
    %67 = dma.hbm_to_vmem [thread:$0]  %s4, 1024, %s65, %s56
    %v68 = vld [vmem:[%s0] sm:$0xf]
    %v69 = vld [vmem:[%s0 + $0x4] sm:$0xf]
    %v70 = vld [vmem:[%s0 + $0x8] sm:$0xf]
    %v71 = vld [vmem:[%s0 + $0xc] sm:$0xf]
    %v72 = vld [vmem:[%s0 + $0x10] sm:$0xf]
    %v73 = vld [vmem:[%s0 + $0x14] sm:$0xf]
    %v74 = vld [vmem:[%s0 + $0x18] sm:$0xf]
    %v75 = vld [vmem:[%s0 + $0x1c] sm:$0xf]
    %v76 = vld [vmem:[%s1] sm:$0xff]
    %v77 = vld [vmem:[%s1 + $0x8] sm:$0xff]
    %v78 = vld [vmem:[%s1 + $0x10] sm:$0xff]
    %v79 = vld [vmem:[%s1 + $0x18] sm:$0xff]
    %v80 = vld [vmem:[%s2] sm:$0xf]
    %v82 = vlaneseq
    %v83 = vshrl.u32 %v82, 7
    %v84 = vsub.s32 0, %v83
    %v85 = vrot.slane %v80, %v84
    %v86 = vlaneseq
    %v87 = vshrl.u32 %v86, 7
    %v88 = vsub.s32 1, %v87
    %v89 = vrot.slane %v80, %v88
    %v90 = vlaneseq
    %v91 = vshrl.u32 %v90, 7
    %v92 = vsub.s32 2, %v91
    %v93 = vrot.slane %v80, %v92
    %v94 = vlaneseq
    %v95 = vshrl.u32 %v94, 7
    %v96 = vsub.s32 3, %v95
    %v97 = vrot.slane %v80, %v96
    %v110 = vunpack.c.l.b16 %v68
    %v111 = vunpack.c.l.b16 %v69
    %v112 = vunpack.c.l.b16 %v70
    %v113 = vunpack.c.l.b16 %v71
    %v114 = vunpack.c.l.b16 %v72
    %v115 = vunpack.c.l.b16 %v73
    %v116 = vunpack.c.l.b16 %v74
    %v117 = vunpack.c.l.b16 %v75
    %v118 = vpack.c.b16 %v111, %v110
    %v119 = vpack.c.b16 %v113, %v112
    %v120 = vpack.c.b16 %v115, %v114
    %v121 = vpack.c.b16 %v117, %v116
    %v126 = vunpack.c.l.b16 %v76
    %v127 = vunpack.c.h.b16 %v76
    %v128 = vunpack.c.l.b16 %v77
    %v129 = vunpack.c.h.b16 %v77
    %v130 = vunpack.c.l.b16 %v78
    %v131 = vunpack.c.h.b16 %v78
    %v132 = vunpack.c.l.b16 %v79
    %v133 = vunpack.c.h.b16 %v79
    %v134 = vpack.c.b16 %v130, %v126
    %v135 = vpack.c.b16 %v131, %v127
    %v136 = vpack.c.b16 %v132, %v128
    %v137 = vpack.c.b16 %v133, %v129
    %vm142 = vcmask 130048
    %v144 = vsel %vm142, %v118, 0
    %v147 = vsel %vm142, %v119, 0
    %v150 = vsel %vm142, %v120, 0
    %v153 = vsel %vm142, %v121, 0
    %155 = vmatprep.subr.bf16.mxu0 %v135
    %156 = vmatpush1.bf16.msra.mxu0 %v134
    %157 = vmatprep.subr.bf16.mxu0 0
    %158 = vmatpush1.bf16.msra.mxu0 0
    %159 = vmatprep.subr.bf16.mxu0 0
    %160 = vmatpush1.bf16.msra.mxu0 0
    %161 = vmatprep.subr.bf16.mxu0 0
    %162 = vmatpush1.bf16.msra.mxu0 0
    %163 = vmatprep.subr.bf16.mxu0 0
    %164 = vmatpush1.bf16.msra.mxu0 0
    %165 = vmatprep.subr.bf16.mxu0 0
    %166 = vmatpush1.bf16.msra.mxu0 0
    %167 = vmatprep.subr.bf16.mxu0 0
    %168 = vmatpush1.bf16.msra.mxu0 0
    %169 = vmatprep.subr.bf16.mxu0 0
    %170 = vmatpush1.bf16.msra.mxu0 0
    %171 = vmatprep.subr.bf16.mxu0 0
    %172 = vmatpush1.bf16.msra.mxu0 0
    %173 = vmatprep.subr.bf16.mxu0 0
    %174 = vmatpush1.bf16.msra.mxu0 0
    %175 = vmatprep.subr.bf16.mxu0 0
    %176 = vmatpush1.bf16.msra.mxu0 0
    %177 = vmatprep.subr.bf16.mxu0 0
    %178 = vmatpush1.bf16.msra.mxu0 0
    %179 = vmatprep.subr.bf16.mxu0 0
    %180 = vmatpush1.bf16.msra.mxu0 0
    %181 = vmatprep.subr.bf16.mxu0 0
    %182 = vmatpush1.bf16.msra.mxu0 0
    %183 = vmatprep.subr.bf16.mxu0 0
    %184 = vmatpush1.bf16.msra.mxu0 0
    %185 = vmatprep.subr.bf16.mxu0 0
    %186 = vmatpush1.bf16.msra.mxu0 0
    %187 = vmatprep.mubr.bf16.mxu0 0
    %188 = vmatmul.mubr.bf16.gmra.mrb[0].mxu0 %v144
    %v189 = vpop.f32.mrb[0].mxu0
    %v190 = vadd.f32 %v85, %v189
    %v191 = vpop.f32.mrb[0].mxu0
    %v192 = vadd.f32 %v89, %v191
    %v193 = vpop.f32.mrb[0].mxu0
    %v194 = vadd.f32 %v85, %v193
    %v195 = vpop.f32.mrb[0].mxu0
    %v196 = vadd.f32 %v89, %v195
    %197 = vmatprep.mubr.bf16.mxu0 0
    %198 = vmatmul.mubr.bf16.gmra.mrb[0].mxu0 %v147
    %v199 = vpop.f32.mrb[0].mxu0
    %v200 = vadd.f32 %v85, %v199
    %v201 = vpop.f32.mrb[0].mxu0
    %v202 = vadd.f32 %v89, %v201
    %v203 = vpop.f32.mrb[0].mxu0
    %v204 = vadd.f32 %v85, %v203
    %v205 = vpop.f32.mrb[0].mxu0
    %v206 = vadd.f32 %v89, %v205
    %207 = vmatprep.mubr.bf16.mxu0 0
    %208 = vmatmul.mubr.bf16.gmra.mrb[0].mxu0 %v150
    %v209 = vpop.f32.mrb[0].mxu0
    %v210 = vadd.f32 %v85, %v209
    %v211 = vpop.f32.mrb[0].mxu0
    %v212 = vadd.f32 %v89, %v211
    %v213 = vpop.f32.mrb[0].mxu0
    %v214 = vadd.f32 %v85, %v213
    %v215 = vpop.f32.mrb[0].mxu0
    %v216 = vadd.f32 %v89, %v215
    %217 = vmatprep.mubr.bf16.mxu0 0
    %218 = vmatmul.mubr.bf16.gmra.mrb[0].mxu0 %v153
    %v219 = vpop.f32.mrb[0].mxu0
    %v220 = vadd.f32 %v85, %v219
    %v221 = vpop.f32.mrb[0].mxu0
    %v222 = vadd.f32 %v89, %v221
    %v223 = vpop.f32.mrb[0].mxu0
    %v224 = vadd.f32 %v85, %v223
    %v225 = vpop.f32.mrb[0].mxu0
    %v226 = vadd.f32 %v89, %v225
    %227 = vdwg.mxu0
    %228 = vmatprep.subr.bf16.mxu0 %v137
    %229 = vmatpush1.bf16.msra.mxu0 %v136
    %230 = vmatprep.subr.bf16.mxu0 0
    %231 = vmatpush1.bf16.msra.mxu0 0
    %232 = vmatprep.subr.bf16.mxu0 0
    %233 = vmatpush1.bf16.msra.mxu0 0
    %234 = vmatprep.subr.bf16.mxu0 0
    %235 = vmatpush1.bf16.msra.mxu0 0
    %236 = vmatprep.subr.bf16.mxu0 0
    %237 = vmatpush1.bf16.msra.mxu0 0
    %238 = vmatprep.subr.bf16.mxu0 0
    %239 = vmatpush1.bf16.msra.mxu0 0
    %240 = vmatprep.subr.bf16.mxu0 0
    %241 = vmatpush1.bf16.msra.mxu0 0
    %242 = vmatprep.subr.bf16.mxu0 0
    %243 = vmatpush1.bf16.msra.mxu0 0
    %244 = vmatprep.subr.bf16.mxu0 0
    %245 = vmatpush1.bf16.msra.mxu0 0
    %246 = vmatprep.subr.bf16.mxu0 0
    %247 = vmatpush1.bf16.msra.mxu0 0
    %248 = vmatprep.subr.bf16.mxu0 0
    %249 = vmatpush1.bf16.msra.mxu0 0
    %250 = vmatprep.subr.bf16.mxu0 0
    %251 = vmatpush1.bf16.msra.mxu0 0
    %252 = vmatprep.subr.bf16.mxu0 0
    %253 = vmatpush1.bf16.msra.mxu0 0
    %254 = vmatprep.subr.bf16.mxu0 0
    %255 = vmatpush1.bf16.msra.mxu0 0
    %256 = vmatprep.subr.bf16.mxu0 0
    %257 = vmatpush1.bf16.msra.mxu0 0
    %258 = vmatprep.subr.bf16.mxu0 0
    %259 = vmatpush1.bf16.msra.mxu0 0
    %260 = vmatprep.mubr.bf16.mxu0 0
    %261 = vmatmul.mubr.bf16.gmra.mrb[0].mxu0 %v144
    %v262 = vpop.f32.mrb[0].mxu0
    %v263 = vadd.f32 %v93, %v262
    %v264 = vpop.f32.mrb[0].mxu0
    %v265 = vadd.f32 %v97, %v264
    %v266 = vpop.f32.mrb[0].mxu0
    %v267 = vadd.f32 %v93, %v266
    %v268 = vpop.f32.mrb[0].mxu0
    %v269 = vadd.f32 %v97, %v268
    %270 = vmatprep.mubr.bf16.mxu0 0
    %271 = vmatmul.mubr.bf16.gmra.mrb[0].mxu0 %v147
    %v272 = vpop.f32.mrb[0].mxu0
    %v273 = vadd.f32 %v93, %v272
    %v274 = vpop.f32.mrb[0].mxu0
    %v275 = vadd.f32 %v97, %v274
    %v276 = vpop.f32.mrb[0].mxu0
    %v277 = vadd.f32 %v93, %v276
    %v278 = vpop.f32.mrb[0].mxu0
    %v279 = vadd.f32 %v97, %v278
    %280 = vmatprep.mubr.bf16.mxu0 0
    %281 = vmatmul.mubr.bf16.gmra.mrb[0].mxu0 %v150
    %v282 = vpop.f32.mrb[0].mxu0
    %v283 = vadd.f32 %v93, %v282
    %v284 = vpop.f32.mrb[0].mxu0
    %v285 = vadd.f32 %v97, %v284
    %v286 = vpop.f32.mrb[0].mxu0
    %v287 = vadd.f32 %v93, %v286
    %v288 = vpop.f32.mrb[0].mxu0
    %v289 = vadd.f32 %v97, %v288
    %290 = vmatprep.mubr.bf16.mxu0 0
    %291 = vmatmul.mubr.bf16.gmra.mrb[0].mxu0 %v153
    %v292 = vpop.f32.mrb[0].mxu0
    %v293 = vadd.f32 %v93, %v292
    %v294 = vpop.f32.mrb[0].mxu0
    %v295 = vadd.f32 %v97, %v294
    %v296 = vpop.f32.mrb[0].mxu0
    %v297 = vadd.f32 %v93, %v296
    %v298 = vpop.f32.mrb[0].mxu0
    %v299 = vadd.f32 %v97, %v298
    %300 = vdwg.mxu0
    %301 = vst [vmem:[#allocation2] sm:$0xff] %v190
    %302 = vst [vmem:[#allocation2 + $0x8] sm:$0xff] %v192
    %303 = vst [vmem:[#allocation2 + $0x10] sm:$0xff] %v263
    %304 = vst [vmem:[#allocation2 + $0x18] sm:$0xff] %v265
    %305 = vst [vmem:[#allocation2 + $0x20] sm:$0xff] %v194
    %306 = vst [vmem:[#allocation2 + $0x28] sm:$0xff] %v196
    %307 = vst [vmem:[#allocation2 + $0x30] sm:$0xff] %v267
    %308 = vst [vmem:[#allocation2 + $0x38] sm:$0xff] %v269
    %309 = vst [vmem:[#allocation2 + $0x40] sm:$0xff] %v200
    %310 = vst [vmem:[#allocation2 + $0x48] sm:$0xff] %v202
    %311 = vst [vmem:[#allocation2 + $0x50] sm:$0xff] %v273
    %312 = vst [vmem:[#allocation2 + $0x58] sm:$0xff] %v275
    %313 = vst [vmem:[#allocation2 + $0x60] sm:$0xff] %v204
    %314 = vst [vmem:[#allocation2 + $0x68] sm:$0xff] %v206
    %315 = vst [vmem:[#allocation2 + $0x70] sm:$0xff] %v277
    %316 = vst [vmem:[#allocation2 + $0x78] sm:$0xff] %v279
    %317 = vst [vmem:[#allocation2 + $0x80] sm:$0xff] %v210
    %318 = vst [vmem:[#allocation2 + $0x88] sm:$0xff] %v212
    %319 = vst [vmem:[#allocation2 + $0x90] sm:$0xff] %v283
    %320 = vst [vmem:[#allocation2 + $0x98] sm:$0xff] %v285
    %321 = vst [vmem:[#allocation2 + $0xa0] sm:$0xff] %v214
    %322 = vst [vmem:[#allocation2 + $0xa8] sm:$0xff] %v216
    %323 = vst [vmem:[#allocation2 + $0xb0] sm:$0xff] %v287
    %324 = vst [vmem:[#allocation2 + $0xb8] sm:$0xff] %v289
    %325 = vst [vmem:[#allocation2 + $0xc0] sm:$0xff] %v220
    %326 = vst [vmem:[#allocation2 + $0xc8] sm:$0xff] %v222
    %327 = vst [vmem:[#allocation2 + $0xd0] sm:$0xff] %v293
    %328 = vst [vmem:[#allocation2 + $0xd8] sm:$0xff] %v295
    %329 = vst [vmem:[#allocation2 + $0xe0] sm:$0xff] %v224
    %330 = vst [vmem:[#allocation2 + $0xe8] sm:$0xff] %v226
    %331 = vst [vmem:[#allocation2 + $0xf0] sm:$0xff] %v297
    %332 = vst [vmem:[#allocation2 + $0xf8] sm:$0xff] %v299
    %s333 = smul.u32 4, 16
    %s334 = smul.u32 %s333, 4
    %s335 = sshll.u32 %s334, 4
    %336 = dma.done [#allocation5], %s335
    %v337 = vld [vmem:[#allocation2] sm:$0xff]
    %v338 = vld [vmem:[#allocation2 + $0x8] sm:$0xff]
    %v339 = vld [vmem:[#allocation2 + $0x10] sm:$0xff]
    %v340 = vld [vmem:[#allocation2 + $0x18] sm:$0xff]
    %v341 = vld [vmem:[#allocation3] sm:$0xff]
    %v342 = vld [vmem:[#allocation3 + $0x8] sm:$0xff]
    %v343 = vld [vmem:[#allocation3 + $0x10] sm:$0xff]
    %v344 = vld [vmem:[#allocation3 + $0x18] sm:$0xff]
    %v345 = vld [vmem:[#allocation3 + $0x20] sm:$0xff]
    %v346 = vld [vmem:[#allocation3 + $0x28] sm:$0xff]
    %v347 = vld [vmem:[#allocation3 + $0x30] sm:$0xff]
    %v348 = vld [vmem:[#allocation3 + $0x38] sm:$0xff]
    %v349 = vld [vmem:[#allocation3 + $0x40] sm:$0xff]
    %v350 = vld [vmem:[#allocation3 + $0x48] sm:$0xff]
    %v351 = vld [vmem:[#allocation3 + $0x50] sm:$0xff]
    %v352 = vld [vmem:[#allocation3 + $0x58] sm:$0xff]
    %v353 = vld [vmem:[#allocation3 + $0x60] sm:$0xff]
    %v354 = vld [vmem:[#allocation3 + $0x68] sm:$0xff]
    %v355 = vld [vmem:[#allocation3 + $0x70] sm:$0xff]
    %v356 = vld [vmem:[#allocation3 + $0x78] sm:$0xff]
    %v357 = vld [vmem:[#allocation3 + $0x80] sm:$0xff]
    %v358 = vld [vmem:[#allocation3 + $0x88] sm:$0xff]
    %v359 = vld [vmem:[#allocation3 + $0x90] sm:$0xff]
    %v360 = vld [vmem:[#allocation3 + $0x98] sm:$0xff]
    %v361 = vld [vmem:[#allocation3 + $0xa0] sm:$0xff]
    %v362 = vld [vmem:[#allocation3 + $0xa8] sm:$0xff]
    %v363 = vld [vmem:[#allocation3 + $0xb0] sm:$0xff]
    %v364 = vld [vmem:[#allocation3 + $0xb8] sm:$0xff]
    %v365 = vld [vmem:[#allocation3 + $0xc0] sm:$0xff]
    %v366 = vld [vmem:[#allocation3 + $0xc8] sm:$0xff]
    %v367 = vld [vmem:[#allocation3 + $0xd0] sm:$0xff]
    %v368 = vld [vmem:[#allocation3 + $0xd8] sm:$0xff]
    %v369 = vld [vmem:[#allocation3 + $0xe0] sm:$0xff]
    %v370 = vld [vmem:[#allocation3 + $0xe8] sm:$0xff]
    %v371 = vld [vmem:[#allocation3 + $0xf0] sm:$0xff]
    %v372 = vld [vmem:[#allocation3 + $0xf8] sm:$0xff]
    %373 = vmatprep.subr.bf16.mxu0 %v342
    %374 = vmatpush1.bf16.msra.mxu0 %v341
    %375 = vmatprep.subr.bf16.mxu0 %v346
    %376 = vmatpush1.bf16.msra.mxu0 %v345
    %377 = vmatprep.subr.bf16.mxu0 %v350
    %378 = vmatpush1.bf16.msra.mxu0 %v349
    %379 = vmatprep.subr.bf16.mxu0 %v354
    %380 = vmatpush1.bf16.msra.mxu0 %v353
    %381 = vmatprep.subr.bf16.mxu0 %v358
    %382 = vmatpush1.bf16.msra.mxu0 %v357
    %383 = vmatprep.subr.bf16.mxu0 %v362
    %384 = vmatpush1.bf16.msra.mxu0 %v361
    %385 = vmatprep.subr.bf16.mxu0 %v366
    %386 = vmatpush1.bf16.msra.mxu0 %v365
    %387 = vmatprep.subr.bf16.mxu0 %v370
    %388 = vmatpush1.bf16.msra.mxu0 %v369
    %389 = vmatprep.subr.bf16.mxu0 0
    %390 = vmatpush1.bf16.msra.mxu0 0
    %391 = vmatprep.subr.bf16.mxu0 0
    %392 = vmatpush1.bf16.msra.mxu0 0
    %393 = vmatprep.subr.bf16.mxu0 0
    %394 = vmatpush1.bf16.msra.mxu0 0
    %395 = vmatprep.subr.bf16.mxu0 0
    %396 = vmatpush1.bf16.msra.mxu0 0
    %397 = vmatprep.subr.bf16.mxu0 0
    %398 = vmatpush1.bf16.msra.mxu0 0
    %399 = vmatprep.subr.bf16.mxu0 0
    %400 = vmatpush1.bf16.msra.mxu0 0
    %401 = vmatprep.subr.bf16.mxu0 0
    %402 = vmatpush1.bf16.msra.mxu0 0
    %403 = vmatprep.subr.bf16.mxu0 0
    %404 = vmatpush1.bf16.msra.mxu0 0
    %405 = vmatprep.mubr.bf16.mxu0 0
    %406 = vmatmul.mubr.bf16.gmra.mrb[0].mxu0 0
    %v407 = vpop.f32.mrb[0].mxu0
    %v408 = vadd.f32 0.0, %v407
    %v409 = vpop.f32.mrb[0].mxu0
    %v410 = vadd.f32 0.0, %v409
    %v411 = vpop.f32.mrb[0].mxu0
    %v412 = vpop.f32.mrb[0].mxu0
    %413 = vdwg.mxu0
    %414 = vmatprep.subr.bf16.mxu0 %v344
    %415 = vmatpush1.bf16.msra.mxu0 %v343
    %416 = vmatprep.subr.bf16.mxu0 %v348
    %417 = vmatpush1.bf16.msra.mxu0 %v347
    %418 = vmatprep.subr.bf16.mxu0 %v352
    %419 = vmatpush1.bf16.msra.mxu0 %v351
    %420 = vmatprep.subr.bf16.mxu0 %v356
    %421 = vmatpush1.bf16.msra.mxu0 %v355
    %422 = vmatprep.subr.bf16.mxu0 %v360
    %423 = vmatpush1.bf16.msra.mxu0 %v359
    %424 = vmatprep.subr.bf16.mxu0 %v364
    %425 = vmatpush1.bf16.msra.mxu0 %v363
    %426 = vmatprep.subr.bf16.mxu0 %v368
    %427 = vmatpush1.bf16.msra.mxu0 %v367
    %428 = vmatprep.subr.bf16.mxu0 %v372
    %429 = vmatpush1.bf16.msra.mxu0 %v371
    %430 = vmatprep.subr.bf16.mxu0 0
    %431 = vmatpush1.bf16.msra.mxu0 0
    %432 = vmatprep.subr.bf16.mxu0 0
    %433 = vmatpush1.bf16.msra.mxu0 0
    %434 = vmatprep.subr.bf16.mxu0 0
    %435 = vmatpush1.bf16.msra.mxu0 0
    %436 = vmatprep.subr.bf16.mxu0 0
    %437 = vmatpush1.bf16.msra.mxu0 0
    %438 = vmatprep.subr.bf16.mxu0 0
    %439 = vmatpush1.bf16.msra.mxu0 0
    %440 = vmatprep.subr.bf16.mxu0 0
    %441 = vmatpush1.bf16.msra.mxu0 0
    %442 = vmatprep.subr.bf16.mxu0 0
    %443 = vmatpush1.bf16.msra.mxu0 0
    %444 = vmatprep.subr.bf16.mxu0 0
    %445 = vmatpush1.bf16.msra.mxu0 0
    %446 = vmatprep.mubr.bf16.mxu0 0
    %447 = vmatmul.mubr.bf16.gmra.mrb[0].mxu0 0
    %v448 = vpop.f32.mrb[0].mxu0
    %v449 = vadd.f32 0.0, %v448
    %v450 = vpop.f32.mrb[0].mxu0
    %v451 = vadd.f32 0.0, %v450
    %v452 = vpop.f32.mrb[0].mxu0
    %v453 = vpop.f32.mrb[0].mxu0
    %454 = vdwg.mxu0
    %v455 = vadd.f32 %v337, %v408
    %v456 = vadd.f32 %v338, %v410
    %v457 = vadd.f32 %v339, %v449
    %v458 = vadd.f32 %v340, %v451
    %v459 = vxor.u32 %v455, 2147483648
    %v460 = vxor.u32 %v456, 2147483648
    %v461 = vxor.u32 %v457, 2147483648
    %v462 = vmul.f32 %v459, 1.442695
    %v463 = vpow.pop %v462
    %v464 = vmul.f32 %v460, 1.442695
    %v465 = vpow.pop %v464
    %v466 = vmul.f32 %v461, 1.442695
    %v467 = vpow.pop %v466
    %v468 = vadd.f32 %v463, 1.0
    %v469 = vadd.f32 %v465, 1.0
    %v470 = vadd.f32 %v467, 1.0
    %v471 = vrcp.pop %v468
    %v472 = vmul.f32 1.0, %v471
    %v473 = vrcp.pop %v469
    %v474 = vmul.f32 1.0, %v473
    %v475 = vrcp.pop %v470
    %v476 = vmul.f32 1.0, %v475
    %v477 = vtanh.pop %v458
    %v478 = vmul.f32 %v474, 0.0
    %v479 = vmul.f32 %v472, %v477
    %v480 = vadd.f32 %v478, %v479
    %v481 = vtanh.pop %v480
    %v482 = vmul.f32 %v476, %v481
    %v483 = vld [vmem:[#allocation2 + $0x20] sm:$0xff]
    %v484 = vld [vmem:[#allocation2 + $0x28] sm:$0xff]
    %v485 = vld [vmem:[#allocation2 + $0x30] sm:$0xff]
    %v486 = vld [vmem:[#allocation2 + $0x38] sm:$0xff]
    %v487 = vpack.c.bf16 %v482, %v482
    %488 = vmatprep.subr.bf16.mxu0 %v342
    %489 = vmatpush1.bf16.msra.mxu0 %v341
    %490 = vmatprep.subr.bf16.mxu0 %v346
    %491 = vmatpush1.bf16.msra.mxu0 %v345
    %492 = vmatprep.subr.bf16.mxu0 %v350
    %493 = vmatpush1.bf16.msra.mxu0 %v349
    %494 = vmatprep.subr.bf16.mxu0 %v354
    %495 = vmatpush1.bf16.msra.mxu0 %v353
    %496 = vmatprep.subr.bf16.mxu0 %v358
    %497 = vmatpush1.bf16.msra.mxu0 %v357
    %498 = vmatprep.subr.bf16.mxu0 %v362
    %499 = vmatpush1.bf16.msra.mxu0 %v361
    %500 = vmatprep.subr.bf16.mxu0 %v366
    %501 = vmatpush1.bf16.msra.mxu0 %v365
    %502 = vmatprep.subr.bf16.mxu0 %v370
    %503 = vmatpush1.bf16.msra.mxu0 %v369
    %504 = vmatprep.subr.bf16.mxu0 0
    %505 = vmatpush1.bf16.msra.mxu0 0
    %506 = vmatprep.subr.bf16.mxu0 0
    %507 = vmatpush1.bf16.msra.mxu0 0
    %508 = vmatprep.subr.bf16.mxu0 0
    %509 = vmatpush1.bf16.msra.mxu0 0
    %510 = vmatprep.subr.bf16.mxu0 0
    %511 = vmatpush1.bf16.msra.mxu0 0
    %512 = vmatprep.subr.bf16.mxu0 0
    %513 = vmatpush1.bf16.msra.mxu0 0
    %514 = vmatprep.subr.bf16.mxu0 0
    %515 = vmatpush1.bf16.msra.mxu0 0
    %516 = vmatprep.subr.bf16.mxu0 0
    %517 = vmatpush1.bf16.msra.mxu0 0
    %518 = vmatprep.subr.bf16.mxu0 0
    %519 = vmatpush1.bf16.msra.mxu0 0
    %520 = vmatprep.mubr.bf16.mxu0 0
    %521 = vmatmul.mubr.bf16.gmra.mrb[0].mxu0 %v487
    %v522 = vpop.f32.mrb[0].mxu0
    %v523 = vadd.f32 0.0, %v522
    %v524 = vpop.f32.mrb[0].mxu0
    %v525 = vadd.f32 0.0, %v524
    %v526 = vpop.f32.mrb[0].mxu0
    %v527 = vpop.f32.mrb[0].mxu0
    %528 = vdwg.mxu0
    %529 = vmatprep.subr.bf16.mxu0 %v344
    %530 = vmatpush1.bf16.msra.mxu0 %v343
    %531 = vmatprep.subr.bf16.mxu0 %v348
    %532 = vmatpush1.bf16.msra.mxu0 %v347
    %533 = vmatprep.subr.bf16.mxu0 %v352
    %534 = vmatpush1.bf16.msra.mxu0 %v351
    %535 = vmatprep.subr.bf16.mxu0 %v356
    %536 = vmatpush1.bf16.msra.mxu0 %v355
    %537 = vmatprep.subr.bf16.mxu0 %v360
    %538 = vmatpush1.bf16.msra.mxu0 %v359
    %539 = vmatprep.subr.bf16.mxu0 %v364
    %540 = vmatpush1.bf16.msra.mxu0 %v363
    %541 = vmatprep.subr.bf16.mxu0 %v368
    %542 = vmatpush1.bf16.msra.mxu0 %v367
    %543 = vmatprep.subr.bf16.mxu0 %v372
    %544 = vmatpush1.bf16.msra.mxu0 %v371
    %545 = vmatprep.subr.bf16.mxu0 0
    %546 = vmatpush1.bf16.msra.mxu0 0
    %547 = vmatprep.subr.bf16.mxu0 0
    %548 = vmatpush1.bf16.msra.mxu0 0
    %549 = vmatprep.subr.bf16.mxu0 0
    %550 = vmatpush1.bf16.msra.mxu0 0
    %551 = vmatprep.subr.bf16.mxu0 0
    %552 = vmatpush1.bf16.msra.mxu0 0
    %553 = vmatprep.subr.bf16.mxu0 0
    %554 = vmatpush1.bf16.msra.mxu0 0
    %555 = vmatprep.subr.bf16.mxu0 0
    %556 = vmatpush1.bf16.msra.mxu0 0
    %557 = vmatprep.subr.bf16.mxu0 0
    %558 = vmatpush1.bf16.msra.mxu0 0
    %559 = vmatprep.subr.bf16.mxu0 0
    %560 = vmatpush1.bf16.msra.mxu0 0
    %561 = vmatprep.mubr.bf16.mxu0 0
    %562 = vmatmul.mubr.bf16.gmra.mrb[0].mxu0 %v487
    %v563 = vpop.f32.mrb[0].mxu0
    %v564 = vadd.f32 0.0, %v563
    %v565 = vpop.f32.mrb[0].mxu0
    %v566 = vadd.f32 0.0, %v565
    %v567 = vpop.f32.mrb[0].mxu0
    %v568 = vpop.f32.mrb[0].mxu0
    %569 = vdwg.mxu0
    %v570 = vadd.f32 %v483, %v523
    %v571 = vadd.f32 %v484, %v525
    %v572 = vadd.f32 %v485, %v564
    %v573 = vadd.f32 %v486, %v566
    %v574 = vxor.u32 %v570, 2147483648
    %v575 = vxor.u32 %v571, 2147483648
    %v576 = vxor.u32 %v572, 2147483648
    %v577 = vmul.f32 %v574, 1.442695
    %v578 = vpow.pop %v577
    %v579 = vmul.f32 %v575, 1.442695
    %v580 = vpow.pop %v579
    %v581 = vmul.f32 %v576, 1.442695
    %v582 = vpow.pop %v581
    %v583 = vadd.f32 %v578, 1.0
    %v584 = vadd.f32 %v580, 1.0
    %v585 = vadd.f32 %v582, 1.0
    %v586 = vrcp.pop %v583
    %v587 = vmul.f32 1.0, %v586
    %v588 = vrcp.pop %v584
    %v589 = vmul.f32 1.0, %v588
    %v590 = vrcp.pop %v585
    %v591 = vmul.f32 1.0, %v590
    %v592 = vtanh.pop %v573
    %v593 = vmul.f32 %v589, %v480
    %v594 = vmul.f32 %v587, %v592
    %v595 = vadd.f32 %v593, %v594
    %v596 = vtanh.pop %v595
    %v597 = vmul.f32 %v591, %v596
    %v598 = vld [vmem:[#allocation2 + $0x40] sm:$0xff]
    %v599 = vld [vmem:[#allocation2 + $0x48] sm:$0xff]
    %v600 = vld [vmem:[#allocation2 + $0x50] sm:$0xff]
    %v601 = vld [vmem:[#allocation2 + $0x58] sm:$0xff]
    %v602 = vpack.c.bf16 %v597, %v597
    %603 = vmatprep.subr.bf16.mxu0 %v342
    %604 = vmatpush1.bf16.msra.mxu0 %v341
    %605 = vmatprep.subr.bf16.mxu0 %v346
    %606 = vmatpush1.bf16.msra.mxu0 %v345
    %607 = vmatprep.subr.bf16.mxu0 %v350
    %608 = vmatpush1.bf16.msra.mxu0 %v349
    %609 = vmatprep.subr.bf16.mxu0 %v354
    %610 = vmatpush1.bf16.msra.mxu0 %v353
    %611 = vmatprep.subr.bf16.mxu0 %v358
    %612 = vmatpush1.bf16.msra.mxu0 %v357
    %613 = vmatprep.subr.bf16.mxu0 %v362
    %614 = vmatpush1.bf16.msra.mxu0 %v361
    %615 = vmatprep.subr.bf16.mxu0 %v366
    %616 = vmatpush1.bf16.msra.mxu0 %v365
    %617 = vmatprep.subr.bf16.mxu0 %v370
    %618 = vmatpush1.bf16.msra.mxu0 %v369
    %619 = vmatprep.subr.bf16.mxu0 0
    %620 = vmatpush1.bf16.msra.mxu0 0
    %621 = vmatprep.subr.bf16.mxu0 0
    %622 = vmatpush1.bf16.msra.mxu0 0
    %623 = vmatprep.subr.bf16.mxu0 0
    %624 = vmatpush1.bf16.msra.mxu0 0
    %625 = vmatprep.subr.bf16.mxu0 0
    %626 = vmatpush1.bf16.msra.mxu0 0
    %627 = vmatprep.subr.bf16.mxu0 0
    %628 = vmatpush1.bf16.msra.mxu0 0
    %629 = vmatprep.subr.bf16.mxu0 0
    %630 = vmatpush1.bf16.msra.mxu0 0
    %631 = vmatprep.subr.bf16.mxu0 0
    %632 = vmatpush1.bf16.msra.mxu0 0
    %633 = vmatprep.subr.bf16.mxu0 0
    %634 = vmatpush1.bf16.msra.mxu0 0
    %635 = vmatprep.mubr.bf16.mxu0 0
    %636 = vmatmul.mubr.bf16.gmra.mrb[0].mxu0 %v602
    %v637 = vpop.f32.mrb[0].mxu0
    %v638 = vadd.f32 0.0, %v637
    %v639 = vpop.f32.mrb[0].mxu0
    %v640 = vadd.f32 0.0, %v639
    %v641 = vpop.f32.mrb[0].mxu0
    %v642 = vpop.f32.mrb[0].mxu0
    %643 = vdwg.mxu0
    %644 = vmatprep.subr.bf16.mxu0 %v344
    %645 = vmatpush1.bf16.msra.mxu0 %v343
    %646 = vmatprep.subr.bf16.mxu0 %v348
    %647 = vmatpush1.bf16.msra.mxu0 %v347
    %648 = vmatprep.subr.bf16.mxu0 %v352
    %649 = vmatpush1.bf16.msra.mxu0 %v351
    %650 = vmatprep.subr.bf16.mxu0 %v356
    %651 = vmatpush1.bf16.msra.mxu0 %v355
    %652 = vmatprep.subr.bf16.mxu0 %v360
    %653 = vmatpush1.bf16.msra.mxu0 %v359
    %654 = vmatprep.subr.bf16.mxu0 %v364
    %655 = vmatpush1.bf16.msra.mxu0 %v363
    %656 = vmatprep.subr.bf16.mxu0 %v368
    %657 = vmatpush1.bf16.msra.mxu0 %v367
    %658 = vmatprep.subr.bf16.mxu0 %v372
    %659 = vmatpush1.bf16.msra.mxu0 %v371
    %660 = vmatprep.subr.bf16.mxu0 0
    %661 = vmatpush1.bf16.msra.mxu0 0
    %662 = vmatprep.subr.bf16.mxu0 0
    %663 = vmatpush1.bf16.msra.mxu0 0
    %664 = vmatprep.subr.bf16.mxu0 0
    %665 = vmatpush1.bf16.msra.mxu0 0
    %666 = vmatprep.subr.bf16.mxu0 0
    %667 = vmatpush1.bf16.msra.mxu0 0
    %668 = vmatprep.subr.bf16.mxu0 0
    %669 = vmatpush1.bf16.msra.mxu0 0
    %670 = vmatprep.subr.bf16.mxu0 0
    %671 = vmatpush1.bf16.msra.mxu0 0
    %672 = vmatprep.subr.bf16.mxu0 0
    %673 = vmatpush1.bf16.msra.mxu0 0
    %674 = vmatprep.subr.bf16.mxu0 0
    %675 = vmatpush1.bf16.msra.mxu0 0
    %676 = vmatprep.mubr.bf16.mxu0 0
    %677 = vmatmul.mubr.bf16.gmra.mrb[0].mxu0 %v602
    %v678 = vpop.f32.mrb[0].mxu0
    %v679 = vadd.f32 0.0, %v678
    %v680 = vpop.f32.mrb[0].mxu0
    %v681 = vadd.f32 0.0, %v680
    %v682 = vpop.f32.mrb[0].mxu0
    %v683 = vpop.f32.mrb[0].mxu0
    %684 = vdwg.mxu0
    %v685 = vadd.f32 %v598, %v638
    %v686 = vadd.f32 %v599, %v640
    %v687 = vadd.f32 %v600, %v679
    %v688 = vadd.f32 %v601, %v681
    %v689 = vxor.u32 %v685, 2147483648
    %v690 = vxor.u32 %v686, 2147483648
    %v691 = vxor.u32 %v687, 2147483648
    %v692 = vmul.f32 %v689, 1.442695
    %v693 = vpow.pop %v692
    %v694 = vmul.f32 %v690, 1.442695
    %v695 = vpow.pop %v694
    %v696 = vmul.f32 %v691, 1.442695
    %v697 = vpow.pop %v696
    %v698 = vadd.f32 %v693, 1.0
    %v699 = vadd.f32 %v695, 1.0
    %v700 = vadd.f32 %v697, 1.0
    %v701 = vrcp.pop %v698
    %v702 = vmul.f32 1.0, %v701
    %v703 = vrcp.pop %v699
    %v704 = vmul.f32 1.0, %v703
    %v705 = vrcp.pop %v700
    %v706 = vmul.f32 1.0, %v705
    %v707 = vtanh.pop %v688
    %v708 = vmul.f32 %v704, %v595
    %v709 = vmul.f32 %v702, %v707
    %v710 = vadd.f32 %v708, %v709
    %v711 = vtanh.pop %v710
    %v712 = vmul.f32 %v706, %v711
    %v713 = vld [vmem:[#allocation2 + $0x60] sm:$0xff]
    %v714 = vld [vmem:[#allocation2 + $0x68] sm:$0xff]
    %v715 = vld [vmem:[#allocation2 + $0x70] sm:$0xff]
    %v716 = vld [vmem:[#allocation2 + $0x78] sm:$0xff]
    %v717 = vpack.c.bf16 %v712, %v712
    %718 = vmatprep.subr.bf16.mxu0 %v342
    %719 = vmatpush1.bf16.msra.mxu0 %v341
    %720 = vmatprep.subr.bf16.mxu0 %v346
    %721 = vmatpush1.bf16.msra.mxu0 %v345
    %722 = vmatprep.subr.bf16.mxu0 %v350
    %723 = vmatpush1.bf16.msra.mxu0 %v349
    %724 = vmatprep.subr.bf16.mxu0 %v354
    %725 = vmatpush1.bf16.msra.mxu0 %v353
    %726 = vmatprep.subr.bf16.mxu0 %v358
    %727 = vmatpush1.bf16.msra.mxu0 %v357
    %728 = vmatprep.subr.bf16.mxu0 %v362
    %729 = vmatpush1.bf16.msra.mxu0 %v361
    %730 = vmatprep.subr.bf16.mxu0 %v366
    %731 = vmatpush1.bf16.msra.mxu0 %v365
    %732 = vmatprep.subr.bf16.mxu0 %v370
    %733 = vmatpush1.bf16.msra.mxu0 %v369
    %734 = vmatprep.subr.bf16.mxu0 0
    %735 = vmatpush1.bf16.msra.mxu0 0
    %736 = vmatprep.subr.bf16.mxu0 0
    %737 = vmatpush1.bf16.msra.mxu0 0
    %738 = vmatprep.subr.bf16.mxu0 0
    %739 = vmatpush1.bf16.msra.mxu0 0
    %740 = vmatprep.subr.bf16.mxu0 0
    %741 = vmatpush1.bf16.msra.mxu0 0
    %742 = vmatprep.subr.bf16.mxu0 0
    %743 = vmatpush1.bf16.msra.mxu0 0
    %744 = vmatprep.subr.bf16.mxu0 0
    %745 = vmatpush1.bf16.msra.mxu0 0
    %746 = vmatprep.subr.bf16.mxu0 0
    %747 = vmatpush1.bf16.msra.mxu0 0
    %748 = vmatprep.subr.bf16.mxu0 0
    %749 = vmatpush1.bf16.msra.mxu0 0
    %750 = vmatprep.mubr.bf16.mxu0 0
    %751 = vmatmul.mubr.bf16.gmra.mrb[0].mxu0 %v717
    %v752 = vpop.f32.mrb[0].mxu0
    %v753 = vadd.f32 0.0, %v752
    %v754 = vpop.f32.mrb[0].mxu0
    %v755 = vadd.f32 0.0, %v754
    %v756 = vpop.f32.mrb[0].mxu0
    %v757 = vpop.f32.mrb[0].mxu0
    %758 = vdwg.mxu0
    %759 = vmatprep.subr.bf16.mxu0 %v344
    %760 = vmatpush1.bf16.msra.mxu0 %v343
    %761 = vmatprep.subr.bf16.mxu0 %v348
    %762 = vmatpush1.bf16.msra.mxu0 %v347
    %763 = vmatprep.subr.bf16.mxu0 %v352
    %764 = vmatpush1.bf16.msra.mxu0 %v351
    %765 = vmatprep.subr.bf16.mxu0 %v356
    %766 = vmatpush1.bf16.msra.mxu0 %v355
    %767 = vmatprep.subr.bf16.mxu0 %v360
    %768 = vmatpush1.bf16.msra.mxu0 %v359
    %769 = vmatprep.subr.bf16.mxu0 %v364
    %770 = vmatpush1.bf16.msra.mxu0 %v363
    %771 = vmatprep.subr.bf16.mxu0 %v368
    %772 = vmatpush1.bf16.msra.mxu0 %v367
    %773 = vmatprep.subr.bf16.mxu0 %v372
    %774 = vmatpush1.bf16.msra.mxu0 %v371
    %775 = vmatprep.subr.bf16.mxu0 0
    %776 = vmatpush1.bf16.msra.mxu0 0
    %777 = vmatprep.subr.bf16.mxu0 0
    %778 = vmatpush1.bf16.msra.mxu0 0
    %779 = vmatprep.subr.bf16.mxu0 0
    %780 = vmatpush1.bf16.msra.mxu0 0
    %781 = vmatprep.subr.bf16.mxu0 0
    %782 = vmatpush1.bf16.msra.mxu0 0
    %783 = vmatprep.subr.bf16.mxu0 0
    %784 = vmatpush1.bf16.msra.mxu0 0
    %785 = vmatprep.subr.bf16.mxu0 0
    %786 = vmatpush1.bf16.msra.mxu0 0
    %787 = vmatprep.subr.bf16.mxu0 0
    %788 = vmatpush1.bf16.msra.mxu0 0
    %789 = vmatprep.subr.bf16.mxu0 0
    %790 = vmatpush1.bf16.msra.mxu0 0
    %791 = vmatprep.mubr.bf16.mxu0 0
    %792 = vmatmul.mubr.bf16.gmra.mrb[0].mxu0 %v717
    %v793 = vpop.f32.mrb[0].mxu0
    %v794 = vadd.f32 0.0, %v793
    %v795 = vpop.f32.mrb[0].mxu0
    %v796 = vadd.f32 0.0, %v795
    %v797 = vpop.f32.mrb[0].mxu0
    %v798 = vpop.f32.mrb[0].mxu0
    %799 = vdwg.mxu0
    %v800 = vadd.f32 %v713, %v753
    %v801 = vadd.f32 %v714, %v755
    %v802 = vadd.f32 %v715, %v794
    %v803 = vadd.f32 %v716, %v796
    %v804 = vxor.u32 %v800, 2147483648
    %v805 = vxor.u32 %v801, 2147483648
    %v806 = vxor.u32 %v802, 2147483648
    %v807 = vmul.f32 %v804, 1.442695
    %v808 = vpow.pop %v807
    %v809 = vmul.f32 %v805, 1.442695
    %v810 = vpow.pop %v809
    %v811 = vmul.f32 %v806, 1.442695
    %v812 = vpow.pop %v811
    %v813 = vadd.f32 %v808, 1.0
    %v814 = vadd.f32 %v810, 1.0
    %v815 = vadd.f32 %v812, 1.0
    %v816 = vrcp.pop %v813
    %v817 = vmul.f32 1.0, %v816
    %v818 = vrcp.pop %v814
    %v819 = vmul.f32 1.0, %v818
    %v820 = vrcp.pop %v815
    %v821 = vmul.f32 1.0, %v820
    %v822 = vtanh.pop %v803
    %v823 = vmul.f32 %v819, %v710
    %v824 = vmul.f32 %v817, %v822
    %v825 = vadd.f32 %v823, %v824
    %v826 = vtanh.pop %v825
    %v827 = vmul.f32 %v821, %v826
    %v828 = vld [vmem:[#allocation2 + $0x80] sm:$0xff]
    %v829 = vld [vmem:[#allocation2 + $0x88] sm:$0xff]
    %v830 = vld [vmem:[#allocation2 + $0x90] sm:$0xff]
    %v831 = vld [vmem:[#allocation2 + $0x98] sm:$0xff]
    %v832 = vpack.c.bf16 %v827, %v827
    %833 = vmatprep.subr.bf16.mxu0 %v342
    %834 = vmatpush1.bf16.msra.mxu0 %v341
    %835 = vmatprep.subr.bf16.mxu0 %v346
    %836 = vmatpush1.bf16.msra.mxu0 %v345
    %837 = vmatprep.subr.bf16.mxu0 %v350
    %838 = vmatpush1.bf16.msra.mxu0 %v349
    %839 = vmatprep.subr.bf16.mxu0 %v354
    %840 = vmatpush1.bf16.msra.mxu0 %v353
    %841 = vmatprep.subr.bf16.mxu0 %v358
    %842 = vmatpush1.bf16.msra.mxu0 %v357
    %843 = vmatprep.subr.bf16.mxu0 %v362
    %844 = vmatpush1.bf16.msra.mxu0 %v361
    %845 = vmatprep.subr.bf16.mxu0 %v366
    %846 = vmatpush1.bf16.msra.mxu0 %v365
    %847 = vmatprep.subr.bf16.mxu0 %v370
    %848 = vmatpush1.bf16.msra.mxu0 %v369
    %849 = vmatprep.subr.bf16.mxu0 0
    %850 = vmatpush1.bf16.msra.mxu0 0
    %851 = vmatprep.subr.bf16.mxu0 0
    %852 = vmatpush1.bf16.msra.mxu0 0
    %853 = vmatprep.subr.bf16.mxu0 0
    %854 = vmatpush1.bf16.msra.mxu0 0
    %855 = vmatprep.subr.bf16.mxu0 0
    %856 = vmatpush1.bf16.msra.mxu0 0
    %857 = vmatprep.subr.bf16.mxu0 0
    %858 = vmatpush1.bf16.msra.mxu0 0
    %859 = vmatprep.subr.bf16.mxu0 0
    %860 = vmatpush1.bf16.msra.mxu0 0
    %861 = vmatprep.subr.bf16.mxu0 0
    %862 = vmatpush1.bf16.msra.mxu0 0
    %863 = vmatprep.subr.bf16.mxu0 0
    %864 = vmatpush1.bf16.msra.mxu0 0
    %865 = vmatprep.mubr.bf16.mxu0 0
    %866 = vmatmul.mubr.bf16.gmra.mrb[0].mxu0 %v832
    %v867 = vpop.f32.mrb[0].mxu0
    %v868 = vadd.f32 0.0, %v867
    %v869 = vpop.f32.mrb[0].mxu0
    %v870 = vadd.f32 0.0, %v869
    %v871 = vpop.f32.mrb[0].mxu0
    %v872 = vpop.f32.mrb[0].mxu0
    %873 = vdwg.mxu0
    %874 = vmatprep.subr.bf16.mxu0 %v344
    %875 = vmatpush1.bf16.msra.mxu0 %v343
    %876 = vmatprep.subr.bf16.mxu0 %v348
    %877 = vmatpush1.bf16.msra.mxu0 %v347
    %878 = vmatprep.subr.bf16.mxu0 %v352
    %879 = vmatpush1.bf16.msra.mxu0 %v351
    %880 = vmatprep.subr.bf16.mxu0 %v356
    %881 = vmatpush1.bf16.msra.mxu0 %v355
    %882 = vmatprep.subr.bf16.mxu0 %v360
    %883 = vmatpush1.bf16.msra.mxu0 %v359
    %884 = vmatprep.subr.bf16.mxu0 %v364
    %885 = vmatpush1.bf16.msra.mxu0 %v363
    %886 = vmatprep.subr.bf16.mxu0 %v368
    %887 = vmatpush1.bf16.msra.mxu0 %v367
    %888 = vmatprep.subr.bf16.mxu0 %v372
    %889 = vmatpush1.bf16.msra.mxu0 %v371
    %890 = vmatprep.subr.bf16.mxu0 0
    %891 = vmatpush1.bf16.msra.mxu0 0
    %892 = vmatprep.subr.bf16.mxu0 0
    %893 = vmatpush1.bf16.msra.mxu0 0
    %894 = vmatprep.subr.bf16.mxu0 0
    %895 = vmatpush1.bf16.msra.mxu0 0
    %896 = vmatprep.subr.bf16.mxu0 0
    %897 = vmatpush1.bf16.msra.mxu0 0
    %898 = vmatprep.subr.bf16.mxu0 0
    %899 = vmatpush1.bf16.msra.mxu0 0
    %900 = vmatprep.subr.bf16.mxu0 0
    %901 = vmatpush1.bf16.msra.mxu0 0
    %902 = vmatprep.subr.bf16.mxu0 0
    %903 = vmatpush1.bf16.msra.mxu0 0
    %904 = vmatprep.subr.bf16.mxu0 0
    %905 = vmatpush1.bf16.msra.mxu0 0
    %906 = vmatprep.mubr.bf16.mxu0 0
    %907 = vmatmul.mubr.bf16.gmra.mrb[0].mxu0 %v832
    %v908 = vpop.f32.mrb[0].mxu0
    %v909 = vadd.f32 0.0, %v908
    %v910 = vpop.f32.mrb[0].mxu0
    %v911 = vadd.f32 0.0, %v910
    %v912 = vpop.f32.mrb[0].mxu0
    %v913 = vpop.f32.mrb[0].mxu0
    %914 = vdwg.mxu0
    %v915 = vadd.f32 %v828, %v868
    %v916 = vadd.f32 %v829, %v870
    %v917 = vadd.f32 %v830, %v909
    %v918 = vadd.f32 %v831, %v911
    %v919 = vxor.u32 %v915, 2147483648
    %v920 = vxor.u32 %v916, 2147483648
    %v921 = vxor.u32 %v917, 2147483648
    %v922 = vmul.f32 %v919, 1.442695
    %v923 = vpow.pop %v922
    %v924 = vmul.f32 %v920, 1.442695
    %v925 = vpow.pop %v924
    %v926 = vmul.f32 %v921, 1.442695
    %v927 = vpow.pop %v926
    %v928 = vadd.f32 %v923, 1.0
    %v929 = vadd.f32 %v925, 1.0
    %v930 = vadd.f32 %v927, 1.0
    %v931 = vrcp.pop %v928
    %v932 = vmul.f32 1.0, %v931
    %v933 = vrcp.pop %v929
    %v934 = vmul.f32 1.0, %v933
    %v935 = vrcp.pop %v930
    %v936 = vmul.f32 1.0, %v935
    %v937 = vtanh.pop %v918
    %v938 = vmul.f32 %v934, %v825
    %v939 = vmul.f32 %v932, %v937
    %v940 = vadd.f32 %v938, %v939
    %v941 = vtanh.pop %v940
    %v942 = vmul.f32 %v936, %v941
    %v943 = vld [vmem:[#allocation2 + $0xa0] sm:$0xff]
    %v944 = vld [vmem:[#allocation2 + $0xa8] sm:$0xff]
    %v945 = vld [vmem:[#allocation2 + $0xb0] sm:$0xff]
    %v946 = vld [vmem:[#allocation2 + $0xb8] sm:$0xff]
    %v947 = vpack.c.bf16 %v942, %v942
    %948 = vmatprep.subr.bf16.mxu0 %v342
    %949 = vmatpush1.bf16.msra.mxu0 %v341
    %950 = vmatprep.subr.bf16.mxu0 %v346
    %951 = vmatpush1.bf16.msra.mxu0 %v345
    %952 = vmatprep.subr.bf16.mxu0 %v350
    %953 = vmatpush1.bf16.msra.mxu0 %v349
    %954 = vmatprep.subr.bf16.mxu0 %v354
    %955 = vmatpush1.bf16.msra.mxu0 %v353
    %956 = vmatprep.subr.bf16.mxu0 %v358
    %957 = vmatpush1.bf16.msra.mxu0 %v357
    %958 = vmatprep.subr.bf16.mxu0 %v362
    %959 = vmatpush1.bf16.msra.mxu0 %v361
    %960 = vmatprep.subr.bf16.mxu0 %v366
    %961 = vmatpush1.bf16.msra.mxu0 %v365
    %962 = vmatprep.subr.bf16.mxu0 %v370
    %963 = vmatpush1.bf16.msra.mxu0 %v369
    %964 = vmatprep.subr.bf16.mxu0 0
    %965 = vmatpush1.bf16.msra.mxu0 0
    %966 = vmatprep.subr.bf16.mxu0 0
    %967 = vmatpush1.bf16.msra.mxu0 0
    %968 = vmatprep.subr.bf16.mxu0 0
    %969 = vmatpush1.bf16.msra.mxu0 0
    %970 = vmatprep.subr.bf16.mxu0 0
    %971 = vmatpush1.bf16.msra.mxu0 0
    %972 = vmatprep.subr.bf16.mxu0 0
    %973 = vmatpush1.bf16.msra.mxu0 0
    %974 = vmatprep.subr.bf16.mxu0 0
    %975 = vmatpush1.bf16.msra.mxu0 0
    %976 = vmatprep.subr.bf16.mxu0 0
    %977 = vmatpush1.bf16.msra.mxu0 0
    %978 = vmatprep.subr.bf16.mxu0 0
    %979 = vmatpush1.bf16.msra.mxu0 0
    %980 = vmatprep.mubr.bf16.mxu0 0
    %981 = vmatmul.mubr.bf16.gmra.mrb[0].mxu0 %v947
    %v982 = vpop.f32.mrb[0].mxu0
    %v983 = vadd.f32 0.0, %v982
    %v984 = vpop.f32.mrb[0].mxu0
    %v985 = vadd.f32 0.0, %v984
    %v986 = vpop.f32.mrb[0].mxu0
    %v987 = vpop.f32.mrb[0].mxu0
    %988 = vdwg.mxu0
    %989 = vmatprep.subr.bf16.mxu0 %v344
    %990 = vmatpush1.bf16.msra.mxu0 %v343
    %991 = vmatprep.subr.bf16.mxu0 %v348
    %992 = vmatpush1.bf16.msra.mxu0 %v347
    %993 = vmatprep.subr.bf16.mxu0 %v352
    %994 = vmatpush1.bf16.msra.mxu0 %v351
    %995 = vmatprep.subr.bf16.mxu0 %v356
    %996 = vmatpush1.bf16.msra.mxu0 %v355
    %997 = vmatprep.subr.bf16.mxu0 %v360
    %998 = vmatpush1.bf16.msra.mxu0 %v359
    %999 = vmatprep.subr.bf16.mxu0 %v364
    %1000 = vmatpush1.bf16.msra.mxu0 %v363
    %1001 = vmatprep.subr.bf16.mxu0 %v368
    %1002 = vmatpush1.bf16.msra.mxu0 %v367
    %1003 = vmatprep.subr.bf16.mxu0 %v372
    %1004 = vmatpush1.bf16.msra.mxu0 %v371
    %1005 = vmatprep.subr.bf16.mxu0 0
    %1006 = vmatpush1.bf16.msra.mxu0 0
    %1007 = vmatprep.subr.bf16.mxu0 0
    %1008 = vmatpush1.bf16.msra.mxu0 0
    %1009 = vmatprep.subr.bf16.mxu0 0
    %1010 = vmatpush1.bf16.msra.mxu0 0
    %1011 = vmatprep.subr.bf16.mxu0 0
    %1012 = vmatpush1.bf16.msra.mxu0 0
    %1013 = vmatprep.subr.bf16.mxu0 0
    %1014 = vmatpush1.bf16.msra.mxu0 0
    %1015 = vmatprep.subr.bf16.mxu0 0
    %1016 = vmatpush1.bf16.msra.mxu0 0
    %1017 = vmatprep.subr.bf16.mxu0 0
    %1018 = vmatpush1.bf16.msra.mxu0 0
    %1019 = vmatprep.subr.bf16.mxu0 0
    %1020 = vmatpush1.bf16.msra.mxu0 0
    %1021 = vmatprep.mubr.bf16.mxu0 0
    %1022 = vmatmul.mubr.bf16.gmra.mrb[0].mxu0 %v947
    %v1023 = vpop.f32.mrb[0].mxu0
    %v1024 = vadd.f32 0.0, %v1023
    %v1025 = vpop.f32.mrb[0].mxu0
    %v1026 = vadd.f32 0.0, %v1025
    %v1027 = vpop.f32.mrb[0].mxu0
    %v1028 = vpop.f32.mrb[0].mxu0
    %1029 = vdwg.mxu0
    %v1030 = vadd.f32 %v943, %v983
    %v1031 = vadd.f32 %v944, %v985
    %v1032 = vadd.f32 %v945, %v1024
    %v1033 = vadd.f32 %v946, %v1026
    %v1034 = vxor.u32 %v1030, 2147483648
    %v1035 = vxor.u32 %v1031, 2147483648
    %v1036 = vxor.u32 %v1032, 2147483648
    %v1037 = vmul.f32 %v1034, 1.442695
    %v1038 = vpow.pop %v1037
    %v1039 = vmul.f32 %v1035, 1.442695
    %v1040 = vpow.pop %v1039
    %v1041 = vmul.f32 %v1036, 1.442695
    %v1042 = vpow.pop %v1041
    %v1043 = vadd.f32 %v1038, 1.0
    %v1044 = vadd.f32 %v1040, 1.0
    %v1045 = vadd.f32 %v1042, 1.0
    %v1046 = vrcp.pop %v1043
    %v1047 = vmul.f32 1.0, %v1046
    %v1048 = vrcp.pop %v1044
    %v1049 = vmul.f32 1.0, %v1048
    %v1050 = vrcp.pop %v1045
    %v1051 = vmul.f32 1.0, %v1050
    %v1052 = vtanh.pop %v1033
    %v1053 = vmul.f32 %v1049, %v940
    %v1054 = vmul.f32 %v1047, %v1052
    %v1055 = vadd.f32 %v1053, %v1054
    %v1056 = vtanh.pop %v1055
    %v1057 = vmul.f32 %v1051, %v1056
    %v1058 = vld [vmem:[#allocation2 + $0xc0] sm:$0xff]
    %v1059 = vld [vmem:[#allocation2 + $0xc8] sm:$0xff]
    %v1060 = vld [vmem:[#allocation2 + $0xd0] sm:$0xff]
    %v1061 = vld [vmem:[#allocation2 + $0xd8] sm:$0xff]
    %v1062 = vpack.c.bf16 %v1057, %v1057
    %1063 = vmatprep.subr.bf16.mxu0 %v342
    %1064 = vmatpush1.bf16.msra.mxu0 %v341
    %1065 = vmatprep.subr.bf16.mxu0 %v346
    %1066 = vmatpush1.bf16.msra.mxu0 %v345
    %1067 = vmatprep.subr.bf16.mxu0 %v350
    %1068 = vmatpush1.bf16.msra.mxu0 %v349
    %1069 = vmatprep.subr.bf16.mxu0 %v354
    %1070 = vmatpush1.bf16.msra.mxu0 %v353
    %1071 = vmatprep.subr.bf16.mxu0 %v358
    %1072 = vmatpush1.bf16.msra.mxu0 %v357
    %1073 = vmatprep.subr.bf16.mxu0 %v362
    %1074 = vmatpush1.bf16.msra.mxu0 %v361
    %1075 = vmatprep.subr.bf16.mxu0 %v366
    %1076 = vmatpush1.bf16.msra.mxu0 %v365
    %1077 = vmatprep.subr.bf16.mxu0 %v370
    %1078 = vmatpush1.bf16.msra.mxu0 %v369
    %1079 = vmatprep.subr.bf16.mxu0 0
    %1080 = vmatpush1.bf16.msra.mxu0 0
    %1081 = vmatprep.subr.bf16.mxu0 0
    %1082 = vmatpush1.bf16.msra.mxu0 0
    %1083 = vmatprep.subr.bf16.mxu0 0
    %1084 = vmatpush1.bf16.msra.mxu0 0
    %1085 = vmatprep.subr.bf16.mxu0 0
    %1086 = vmatpush1.bf16.msra.mxu0 0
    %1087 = vmatprep.subr.bf16.mxu0 0
    %1088 = vmatpush1.bf16.msra.mxu0 0
    %1089 = vmatprep.subr.bf16.mxu0 0
    %1090 = vmatpush1.bf16.msra.mxu0 0
    %1091 = vmatprep.subr.bf16.mxu0 0
    %1092 = vmatpush1.bf16.msra.mxu0 0
    %1093 = vmatprep.subr.bf16.mxu0 0
    %1094 = vmatpush1.bf16.msra.mxu0 0
    %1095 = vmatprep.mubr.bf16.mxu0 0
    %1096 = vmatmul.mubr.bf16.gmra.mrb[0].mxu0 %v1062
    %v1097 = vpop.f32.mrb[0].mxu0
    %v1098 = vadd.f32 0.0, %v1097
    %v1099 = vpop.f32.mrb[0].mxu0
    %v1100 = vadd.f32 0.0, %v1099
    %v1101 = vpop.f32.mrb[0].mxu0
    %v1102 = vpop.f32.mrb[0].mxu0
    %1103 = vdwg.mxu0
    %1104 = vmatprep.subr.bf16.mxu0 %v344
    %1105 = vmatpush1.bf16.msra.mxu0 %v343
    %1106 = vmatprep.subr.bf16.mxu0 %v348
    %1107 = vmatpush1.bf16.msra.mxu0 %v347
    %1108 = vmatprep.subr.bf16.mxu0 %v352
    %1109 = vmatpush1.bf16.msra.mxu0 %v351
    %1110 = vmatprep.subr.bf16.mxu0 %v356
    %1111 = vmatpush1.bf16.msra.mxu0 %v355
    %1112 = vmatprep.subr.bf16.mxu0 %v360
    %1113 = vmatpush1.bf16.msra.mxu0 %v359
    %1114 = vmatprep.subr.bf16.mxu0 %v364
    %1115 = vmatpush1.bf16.msra.mxu0 %v363
    %1116 = vmatprep.subr.bf16.mxu0 %v368
    %1117 = vmatpush1.bf16.msra.mxu0 %v367
    %1118 = vmatprep.subr.bf16.mxu0 %v372
    %1119 = vmatpush1.bf16.msra.mxu0 %v371
    %1120 = vmatprep.subr.bf16.mxu0 0
    %1121 = vmatpush1.bf16.msra.mxu0 0
    %1122 = vmatprep.subr.bf16.mxu0 0
    %1123 = vmatpush1.bf16.msra.mxu0 0
    %1124 = vmatprep.subr.bf16.mxu0 0
    %1125 = vmatpush1.bf16.msra.mxu0 0
    %1126 = vmatprep.subr.bf16.mxu0 0
    %1127 = vmatpush1.bf16.msra.mxu0 0
    %1128 = vmatprep.subr.bf16.mxu0 0
    %1129 = vmatpush1.bf16.msra.mxu0 0
    %1130 = vmatprep.subr.bf16.mxu0 0
    %1131 = vmatpush1.bf16.msra.mxu0 0
    %1132 = vmatprep.subr.bf16.mxu0 0
    %1133 = vmatpush1.bf16.msra.mxu0 0
    %1134 = vmatprep.subr.bf16.mxu0 0
    %1135 = vmatpush1.bf16.msra.mxu0 0
    %1136 = vmatprep.mubr.bf16.mxu0 0
    %1137 = vmatmul.mubr.bf16.gmra.mrb[0].mxu0 %v1062
    %v1138 = vpop.f32.mrb[0].mxu0
    %v1139 = vadd.f32 0.0, %v1138
    %v1140 = vpop.f32.mrb[0].mxu0
    %v1141 = vadd.f32 0.0, %v1140
    %v1142 = vpop.f32.mrb[0].mxu0
    %v1143 = vpop.f32.mrb[0].mxu0
    %1144 = vdwg.mxu0
    %v1145 = vadd.f32 %v1058, %v1098
    %v1146 = vadd.f32 %v1059, %v1100
    %v1147 = vadd.f32 %v1060, %v1139
    %v1148 = vadd.f32 %v1061, %v1141
    %v1149 = vxor.u32 %v1145, 2147483648
    %v1150 = vxor.u32 %v1146, 2147483648
    %v1151 = vxor.u32 %v1147, 2147483648
    %v1152 = vmul.f32 %v1149, 1.442695
    %v1153 = vpow.pop %v1152
    %v1154 = vmul.f32 %v1150, 1.442695
    %v1155 = vpow.pop %v1154
    %v1156 = vmul.f32 %v1151, 1.442695
    %v1157 = vpow.pop %v1156
    %v1158 = vadd.f32 %v1153, 1.0
    %v1159 = vadd.f32 %v1155, 1.0
    %v1160 = vadd.f32 %v1157, 1.0
    %v1161 = vrcp.pop %v1158
    %v1162 = vmul.f32 1.0, %v1161
    %v1163 = vrcp.pop %v1159
    %v1164 = vmul.f32 1.0, %v1163
    %v1165 = vrcp.pop %v1160
    %v1166 = vmul.f32 1.0, %v1165
    %v1167 = vtanh.pop %v1148
    %v1168 = vmul.f32 %v1164, %v1055
    %v1169 = vmul.f32 %v1162, %v1167
    %v1170 = vadd.f32 %v1168, %v1169
    %v1171 = vtanh.pop %v1170
    %v1172 = vmul.f32 %v1166, %v1171
    %v1173 = vld [vmem:[#allocation2 + $0xe0] sm:$0xff]
    %v1174 = vld [vmem:[#allocation2 + $0xe8] sm:$0xff]
    %v1175 = vld [vmem:[#allocation2 + $0xf0] sm:$0xff]
    %v1176 = vld [vmem:[#allocation2 + $0xf8] sm:$0xff]
    %v1177 = vpack.c.bf16 %v1172, %v1172
    %1178 = vmatprep.subr.bf16.mxu0 %v342
    %1179 = vmatpush1.bf16.msra.mxu0 %v341
    %1180 = vmatprep.subr.bf16.mxu0 %v346
    %1181 = vmatpush1.bf16.msra.mxu0 %v345
    %1182 = vmatprep.subr.bf16.mxu0 %v350
    %1183 = vmatpush1.bf16.msra.mxu0 %v349
    %1184 = vmatprep.subr.bf16.mxu0 %v354
    %1185 = vmatpush1.bf16.msra.mxu0 %v353
    %1186 = vmatprep.subr.bf16.mxu0 %v358
    %1187 = vmatpush1.bf16.msra.mxu0 %v357
    %1188 = vmatprep.subr.bf16.mxu0 %v362
    %1189 = vmatpush1.bf16.msra.mxu0 %v361
    %1190 = vmatprep.subr.bf16.mxu0 %v366
    %1191 = vmatpush1.bf16.msra.mxu0 %v365
    %1192 = vmatprep.subr.bf16.mxu0 %v370
    %1193 = vmatpush1.bf16.msra.mxu0 %v369
    %1194 = vmatprep.subr.bf16.mxu0 0
    %1195 = vmatpush1.bf16.msra.mxu0 0
    %1196 = vmatprep.subr.bf16.mxu0 0
    %1197 = vmatpush1.bf16.msra.mxu0 0
    %1198 = vmatprep.subr.bf16.mxu0 0
    %1199 = vmatpush1.bf16.msra.mxu0 0
    %1200 = vmatprep.subr.bf16.mxu0 0
    %1201 = vmatpush1.bf16.msra.mxu0 0
    %1202 = vmatprep.subr.bf16.mxu0 0
    %1203 = vmatpush1.bf16.msra.mxu0 0
    %1204 = vmatprep.subr.bf16.mxu0 0
    %1205 = vmatpush1.bf16.msra.mxu0 0
    %1206 = vmatprep.subr.bf16.mxu0 0
    %1207 = vmatpush1.bf16.msra.mxu0 0
    %1208 = vmatprep.subr.bf16.mxu0 0
    %1209 = vmatpush1.bf16.msra.mxu0 0
    %1210 = vmatprep.mubr.bf16.mxu0 0
    %1211 = vmatmul.mubr.bf16.gmra.mrb[0].mxu0 %v1177
    %v1212 = vpop.f32.mrb[0].mxu0
    %v1213 = vadd.f32 0.0, %v1212
    %v1214 = vpop.f32.mrb[0].mxu0
    %v1215 = vadd.f32 0.0, %v1214
    %v1216 = vpop.f32.mrb[0].mxu0
    %v1217 = vpop.f32.mrb[0].mxu0
    %1218 = vdwg.mxu0
    %1219 = vmatprep.subr.bf16.mxu0 %v344
    %1220 = vmatpush1.bf16.msra.mxu0 %v343
    %1221 = vmatprep.subr.bf16.mxu0 %v348
    %1222 = vmatpush1.bf16.msra.mxu0 %v347
    %1223 = vmatprep.subr.bf16.mxu0 %v352
    %1224 = vmatpush1.bf16.msra.mxu0 %v351
    %1225 = vmatprep.subr.bf16.mxu0 %v356
    %1226 = vmatpush1.bf16.msra.mxu0 %v355
    %1227 = vmatprep.subr.bf16.mxu0 %v360
    %1228 = vmatpush1.bf16.msra.mxu0 %v359
    %1229 = vmatprep.subr.bf16.mxu0 %v364
    %1230 = vmatpush1.bf16.msra.mxu0 %v363
    %1231 = vmatprep.subr.bf16.mxu0 %v368
    %1232 = vmatpush1.bf16.msra.mxu0 %v367
    %1233 = vmatprep.subr.bf16.mxu0 %v372
    %1234 = vmatpush1.bf16.msra.mxu0 %v371
    %1235 = vmatprep.subr.bf16.mxu0 0
    %1236 = vmatpush1.bf16.msra.mxu0 0
    %1237 = vmatprep.subr.bf16.mxu0 0
    %1238 = vmatpush1.bf16.msra.mxu0 0
    %1239 = vmatprep.subr.bf16.mxu0 0
    %1240 = vmatpush1.bf16.msra.mxu0 0
    %1241 = vmatprep.subr.bf16.mxu0 0
    %1242 = vmatpush1.bf16.msra.mxu0 0
    %1243 = vmatprep.subr.bf16.mxu0 0
    %1244 = vmatpush1.bf16.msra.mxu0 0
    %1245 = vmatprep.subr.bf16.mxu0 0
    %1246 = vmatpush1.bf16.msra.mxu0 0
    %1247 = vmatprep.subr.bf16.mxu0 0
    %1248 = vmatpush1.bf16.msra.mxu0 0
    %1249 = vmatprep.subr.bf16.mxu0 0
    %1250 = vmatpush1.bf16.msra.mxu0 0
    %1251 = vmatprep.mubr.bf16.mxu0 0
    %1252 = vmatmul.mubr.bf16.gmra.mrb[0].mxu0 %v1177
    %v1253 = vpop.f32.mrb[0].mxu0
    %v1254 = vadd.f32 0.0, %v1253
    %v1255 = vpop.f32.mrb[0].mxu0
    %v1256 = vadd.f32 0.0, %v1255
    %v1257 = vpop.f32.mrb[0].mxu0
    %v1258 = vpop.f32.mrb[0].mxu0
    %1259 = vdwg.mxu0
    %v1260 = vadd.f32 %v1173, %v1213
    %v1261 = vadd.f32 %v1174, %v1215
    %v1262 = vadd.f32 %v1175, %v1254
    %v1263 = vadd.f32 %v1176, %v1256
    %v1264 = vxor.u32 %v1260, 2147483648
    %v1265 = vxor.u32 %v1261, 2147483648
    %v1266 = vxor.u32 %v1262, 2147483648
    %v1267 = vmul.f32 %v1264, 1.442695
    %v1268 = vpow.pop %v1267
    %v1269 = vmul.f32 %v1265, 1.442695
    %v1270 = vpow.pop %v1269
    %v1271 = vmul.f32 %v1266, 1.442695
    %v1272 = vpow.pop %v1271
    %v1273 = vadd.f32 %v1268, 1.0
    %v1274 = vadd.f32 %v1270, 1.0
    %v1275 = vadd.f32 %v1272, 1.0
    %v1276 = vrcp.pop %v1273
    %v1277 = vmul.f32 1.0, %v1276
    %v1278 = vrcp.pop %v1274
    %v1279 = vmul.f32 1.0, %v1278
    %v1280 = vrcp.pop %v1275
    %v1281 = vmul.f32 1.0, %v1280
    %v1282 = vtanh.pop %v1263
    %v1283 = vmul.f32 %v1279, %v1170
    %v1284 = vmul.f32 %v1277, %v1282
    %v1285 = vadd.f32 %v1283, %v1284
    %v1286 = vtanh.pop %v1285
    %v1287 = vmul.f32 %v1281, %v1286
    %s1288 = smul.u32 %s333, 1
    %s1289 = sshll.u32 %s1288, 4
    %1290 = dma.done %s56, %s1289
    %v1291 = vpack.c.bf16 %v1287, %v1287
    %v1292 = vld [vmem:[#allocation4] sm:$0xff]
    %v1293 = vld [vmem:[#allocation4 + $0x8] sm:$0xff]
    %v1294 = vld [vmem:[#allocation4 + $0x10] sm:$0xff]
    %v1295 = vld [vmem:[#allocation4 + $0x18] sm:$0xff]
    %v1296 = vld [vmem:[#allocation4 + $0x20] sm:$0xff]
    %v1297 = vld [vmem:[#allocation4 + $0x28] sm:$0xff]
    %v1298 = vld [vmem:[#allocation4 + $0x30] sm:$0xff]
    %v1299 = vld [vmem:[#allocation4 + $0x38] sm:$0xff]
    %v1300 = vld [vmem:[%s5] sm:$0x1]
    %v1302 = vlaneseq
    %v1303 = vshrl.u32 %v1302, 7
    %v1304 = vsub.s32 0, %v1303
    %v1305 = vrot.slane %v1300, %v1304
    %1307 = vmatprep.subr.bf16.mxu0 0
    %1308 = vmatpush1.bf16.msra.mxu0 %v1292
    %1309 = vmatprep.subr.bf16.mxu0 0
    %1310 = vmatpush1.bf16.msra.mxu0 %v1293
    %1311 = vmatprep.subr.bf16.mxu0 0
    %1312 = vmatpush1.bf16.msra.mxu0 %v1294
    %1313 = vmatprep.subr.bf16.mxu0 0
    %1314 = vmatpush1.bf16.msra.mxu0 %v1295
    %1315 = vmatprep.subr.bf16.mxu0 0
    %1316 = vmatpush1.bf16.msra.mxu0 %v1296
    %1317 = vmatprep.subr.bf16.mxu0 0
    %1318 = vmatpush1.bf16.msra.mxu0 %v1297
    %1319 = vmatprep.subr.bf16.mxu0 0
    %1320 = vmatpush1.bf16.msra.mxu0 %v1298
    %1321 = vmatprep.subr.bf16.mxu0 0
    %1322 = vmatpush1.bf16.msra.mxu0 %v1299
    %1323 = vmatprep.subr.bf16.mxu0 0
    %1324 = vmatpush1.bf16.msra.mxu0 0
    %1325 = vmatprep.subr.bf16.mxu0 0
    %1326 = vmatpush1.bf16.msra.mxu0 0
    %1327 = vmatprep.subr.bf16.mxu0 0
    %1328 = vmatpush1.bf16.msra.mxu0 0
    %1329 = vmatprep.subr.bf16.mxu0 0
    %1330 = vmatpush1.bf16.msra.mxu0 0
    %1331 = vmatprep.subr.bf16.mxu0 0
    %1332 = vmatpush1.bf16.msra.mxu0 0
    %1333 = vmatprep.subr.bf16.mxu0 0
    %1334 = vmatpush1.bf16.msra.mxu0 0
    %1335 = vmatprep.subr.bf16.mxu0 0
    %1336 = vmatpush1.bf16.msra.mxu0 0
    %1337 = vmatprep.subr.bf16.mxu0 0
    %1338 = vmatpush1.bf16.msra.mxu0 0
    %1339 = vmatprep.mubr.bf16.mxu0 0
    %1340 = vmatmul.mubr.bf16.gmra.mrb[0].mxu0 %v1291
    %v1341 = vpop.f32.mrb[0].mxu0
    %v1342 = vadd.f32 %v1305, %v1341
    %v1343 = vpop.f32.mrb[0].mxu0
    %v1344 = vpop.f32.mrb[0].mxu0
    %v1345 = vpop.f32.mrb[0].mxu0
    %1346 = vdwg.mxu0
    %1347 = vst [vmem:[#allocation6] sm:$0xff] %v1342
    // Predicated region
    $region22: #{tpu_custom_call.1} parent=1 // pred_check
      _
    $region23: #{tpu_custom_call.1} parent=1 // pred_check_branch
      %1349 = sbr.rel (0) target = $region25
    $region24: #{tpu_custom_call.1} parent=1 // pred_region
      %s1351 = ssub.s32 128, 128
      %1352 = vsyncadd [#allocation7], %s1351
      %s1354 = sshll.u32 [#allocation6], 4
      %s1355 = int_to_ptr.vmem [resolvable:$true] %s1354
      %1357 = dma.vmem_to_hbm [thread:$0]  %s1355, 128, %s6, [#allocation7]
    $region25: #{tpu_custom_call.1} parent=1 // pred_fallthru
      _
    // Predicated region
    $region26: #{tpu_custom_call.1} parent=1 // pred_check
      _
    $region27: #{tpu_custom_call.1} parent=1 // pred_check_branch
      %1359 = sbr.rel (0) target = $region29
    $region28: #{tpu_custom_call.1} parent=1 // pred_region
      %1360 = dma.done [#allocation7], 128
    $region29: #{tpu_custom_call.1} parent=1 // pred_fallthru
      _
    %1361 = vsyncpa [#allocation7], 1
  %1362 = vsyncmov [#allocation5]
  %s1363 = vpop.sfrf %1362
  %p1364 = scmp.eq.s32.totalorder %s1363, 0
  %p1365 = pneg %p1364
  %1367 = shalt.err (%p1365)
  %s1368 = scalar_lea.sflag [#allocation5], 1
  %1369 = vsyncmov %s1368
  %s1370 = vpop.sfrf %1369
  %p1371 = scmp.eq.s32.totalorder %s1370, 0
  %p1372 = pneg %p1371
  %1374 = shalt.err (%p1372)

</llo_original>
